<compile_context>
chip_gen: v7x
topology: tpu7x:2x2x1
jax: 0.10.0
libtpu: 0.0.40
codegen_flags: <defaults>
</compile_context>

<pallas_src>
import jax
import jax.numpy as jnp
from jax import lax
from jax.experimental import pallas as pl
from jax.experimental.pallas import tpu as pltpu

LN_EPS = 1e-5
VMEM_LIMIT = 48 * 1024 * 1024  # explicit scoped-VMEM budget (headroom on v7x)


# ----------------------------------------------------------------------------
# Kernel 1: full bidirectional GRU recurrence for one layer (both directions
# fused in one body; input projections x@W_ih+b_ih precomputed by XLA).
#   gi_f_ref, gi_r_ref : (T, 3, N, H)   per-gate [r, z, n] input projections
#   whh_ref            : (6, H, H)      [fwd r,z,n | rev r,z,n]
#   bhh_ref            : (6, 1, H)
#   out_ref            : (T, N, 2H)     fwd hidden in [..., :H], rev in [..., H:]
# ----------------------------------------------------------------------------
def _bigru_kernel(gi_f_ref, gi_r_ref, whh_ref, bhh_ref, out_ref):
    T = gi_f_ref.shape[0]
    N = gi_f_ref.shape[2]
    H = gi_f_ref.shape[3]

    # Hoist the (constant across T) recurrence weights out of the loop.
    wf_r = whh_ref[0].astype(jnp.float32)
    wf_z = whh_ref[1].astype(jnp.float32)
    wf_n = whh_ref[2].astype(jnp.float32)
    wr_r = whh_ref[3].astype(jnp.float32)
    wr_z = whh_ref[4].astype(jnp.float32)
    wr_n = whh_ref[5].astype(jnp.float32)
    bf_r = bhh_ref[0].astype(jnp.float32)
    bf_z = bhh_ref[1].astype(jnp.float32)
    bf_n = bhh_ref[2].astype(jnp.float32)
    br_r = bhh_ref[3].astype(jnp.float32)
    br_z = bhh_ref[4].astype(jnp.float32)
    br_n = bhh_ref[5].astype(jnp.float32)

    def sigmoid(v):
        # exp on the EUP, divide via approx reciprocal (also EUP slot).
        return pl.reciprocal(1.0 + jnp.exp(-v), approx=True)

    def step(i, carry):
        h_f, h_r = carry
        tf = i
        tr = T - 1 - i

        gif = gi_f_ref[tf].astype(jnp.float32)   # (3, N, H)
        gir = gi_r_ref[tr].astype(jnp.float32)   # (3, N, H)

        # The two directions are independent chains; issuing all six small
        # matmuls back-to-back lets their MXU/EUP latency overlap.
        ghf_r = jnp.dot(h_f, wf_r, preferred_element_type=jnp.float32) + bf_r
        ghf_z = jnp.dot(h_f, wf_z, preferred_element_type=jnp.float32) + bf_z
        ghf_n = jnp.dot(h_f, wf_n, preferred_element_type=jnp.float32) + bf_n
        ghr_r = jnp.dot(h_r, wr_r, preferred_element_type=jnp.float32) + br_r
        ghr_z = jnp.dot(h_r, wr_z, preferred_element_type=jnp.float32) + br_z
        ghr_n = jnp.dot(h_r, wr_n, preferred_element_type=jnp.float32) + br_n

        r_f = sigmoid(gif[0] + ghf_r)
        z_f = sigmoid(gif[1] + ghf_z)
        n_f = jnp.tanh(gif[2] + r_f * ghf_n)
        h_f_new = (1.0 - z_f) * n_f + z_f * h_f

        r_r = sigmoid(gir[0] + ghr_r)
        z_r = sigmoid(gir[1] + ghr_z)
        n_r = jnp.tanh(gir[2] + r_r * ghr_n)
        h_r_new = (1.0 - z_r) * n_r + z_r * h_r

        # Write straight into the final concatenated layout: no post-kernel concat.
        out_ref[tf, :, 0:H] = h_f_new.astype(out_ref.dtype)
        out_ref[tr, :, H:2 * H] = h_r_new.astype(out_ref.dtype)
        return h_f_new, h_r_new

    h0 = jnp.zeros((N, H), jnp.float32)
    lax.fori_loop(0, T, step, (h0, h0))


def bigru_layer(x, lp):
    """One bidirectional GRU layer. x: (T, N, D) f32 -> (T, N, 2H)."""
    T, N, D = x.shape
    H = lp["whh"].shape[-1]

    # Time-batched input projection for all timesteps, gates and directions:
    # one big MXU-friendly GEMM handled by XLA (default precision per review).
    # Layout (direction, T, gate, N, H) keeps the gate index off the lane dim.
    gi = jnp.einsum("tnd,kgdh->ktgnh", x, lp["wih"]) + lp["bih"][:, None, :, :, :]

    whh = lp["whh"].reshape(6, H, H)   # contiguous reshape, free
    bhh = lp["bhh"].reshape(6, 1, H)

    out = pl.pallas_call(
        _bigru_kernel,
        out_shape=jax.ShapeDtypeStruct((T, N, 2 * H), x.dtype),
        grid_spec=pltpu.PrefetchScalarGridSpec(
            num_scalar_prefetch=0,
            grid=(1,),
            in_specs=[
                pl.BlockSpec((T, 3, N, H), lambda i: (0, 0, 0, 0)),
                pl.BlockSpec((T, 3, N, H), lambda i: (0, 0, 0, 0)),
                pl.BlockSpec((6, H, H), lambda i: (0, 0, 0)),
                pl.BlockSpec((6, 1, H), lambda i: (0, 0, 0)),
            ],
            out_specs=pl.BlockSpec((T, N, 2 * H), lambda i: (0, 0, 0)),
        ),
        compiler_params=pltpu.CompilerParams(
            dimension_semantics=("arbitrary",),
            vmem_limit_bytes=VMEM_LIMIT,
        ),
    )(gi[0], gi[1], whh, bhh)
    return out


# ----------------------------------------------------------------------------
# Kernel 2: fused TDSFullyConnectedBlock + output Linear on a (rows, F) slab.
#   x_ref: (R, F); w1,w2: (F, F); b1,b2,g,beta: (1, F); w3: (F, F_pad); b3: (1, F_pad)
# ----------------------------------------------------------------------------
def _tds_head_kernel(x_ref, w1_ref, b1_ref, w2_ref, b2_ref,
                     g_ref, beta_ref, w3_ref, b3_ref, out_ref):
    x = x_ref[...].astype(jnp.float32)                                   # (R, F)
    h = jnp.dot(x, w1_ref[...], preferred_element_type=jnp.float32) + b1_ref[...]
    h = jnp.maximum(h, 0.0)                                              # ReLU
    y = jnp.dot(h, w2_ref[...], preferred_element_type=jnp.float32) + b2_ref[...]
    y = y + x                                                            # residual
    mean = jnp.mean(y, axis=-1, keepdims=True)
    c = y - mean
    var = jnp.mean(c * c, axis=-1, keepdims=True)
    yn = c * lax.rsqrt(var + LN_EPS) * g_ref[...] + beta_ref[...]        # LayerNorm
    out = jnp.dot(yn, w3_ref[...], preferred_element_type=jnp.float32) + b3_ref[...]
    out_ref[...] = out.astype(out_ref.dtype)


def tds_head(x, hp):
    """Fused TDS FC block + out Linear. x: (T, N, F) -> (T, N, F_out)."""
    T, N, F = x.shape
    F_out = hp["w3"].shape[1]
    rows = T * N
    x2 = x.reshape(rows, F)                      # lane-dense: features on lanes

    # Lane-dense output: pad the output feature dim to a multiple of 128 so the
    # final store is an unmasked vst; slice the padding back off outside.
    F_pad = max(128, pl.cdiv(F_out, 128) * 128)
    w3 = jnp.pad(hp["w3"], ((0, 0), (0, F_pad - F_out)))
    b3 = jnp.pad(hp["b3"], ((0, 0), (0, F_pad - F_out)))

    # Large row tiles amortize the ~0.35us per-grid-step overhead.
    row_block = 1024 if rows >= 1024 else pl.cdiv(rows, 8) * 8
    padded = pl.cdiv(rows, row_block) * row_block
    if padded != rows:
        # Padded rows go through LayerNorm with var=0 -> rsqrt(eps)*0, benign.
        x2 = jnp.pad(x2, ((0, padded - rows), (0, 0)))

    def full_spec(arr):
        nd = arr.ndim
        return pl.BlockSpec(arr.shape, lambda i, _n=nd: (0,) * _n)

    # TODO(synk): on v7x, give the constant-weight inputs pl.Buffered(1) to free
    # VMEM for a larger row_block at realistic F.
    out = pl.pallas_call(
        _tds_head_kernel,
        out_shape=jax.ShapeDtypeStruct((padded, F_pad), x.dtype),
        grid_spec=pltpu.PrefetchScalarGridSpec(
            num_scalar_prefetch=0,
            grid=(padded // row_block,),
            in_specs=[
                pl.BlockSpec((row_block, F), lambda i: (i, 0)),
                full_spec(hp["w1"]), full_spec(hp["b1"]),
                full_spec(hp["w2"]), full_spec(hp["b2"]),
                full_spec(hp["ln_g"]), full_spec(hp["ln_b"]),
                full_spec(w3), full_spec(b3),
            ],
            out_specs=pl.BlockSpec((row_block, F_pad), lambda i: (i, 0)),
        ),
        compiler_params=pltpu.CompilerParams(
            dimension_semantics=("parallel",),
            vmem_limit_bytes=VMEM_LIMIT,
        ),
    )(x2, hp["w1"], hp["b1"], hp["w2"], hp["b2"],
      hp["ln_g"], hp["ln_b"], w3, b3)

    return out[:rows, :F_out].reshape(T, N, F_out)


def tds_gru_encoder(inputs, params):
    x = inputs.astype(jnp.float32)
    for lp in params["gru"]:
        x = bigru_layer(x, lp)
    return tds_head(x, params["head"])


# ----------------------------------------------------------------------------
# Pure-JAX reference (HIGHEST-precision matmuls) for verification.
# ----------------------------------------------------------------------------
def _gru_direction_ref(x, wih, whh, bih, bhh, reverse):
    # wih: (3, D, H), whh: (3, H, H), bih/bhh: (3, 1, H); gate order [r, z, n].
    H = whh.shape[-1]

    def step(h, x_t):
        gi = jnp.einsum("nd,gdh->gnh", x_t, wih, precision=lax.Precision.HIGHEST) + bih
        gh = jnp.einsum("nh,ghk->gnk", h, whh, precision=lax.Precision.HIGHEST) + bhh
        r = jax.nn.sigmoid(gi[0] + gh[0])
        z = jax.nn.sigmoid(gi[1] + gh[1])
        n = jnp.tanh(gi[2] + r * gh[2])
        h_new = (1.0 - z) * n + z * h
        return h_new, h_new

    xs = x[::-1] if reverse else x
    h0 = jnp.zeros((x.shape[1], H), jnp.float32)
    _, ys = lax.scan(step, h0, xs)
    return ys[::-1] if reverse else ys


def encoder_reference(inputs, params):
    x = inputs.astype(jnp.float32)
    for lp in params["gru"]:
        of = _gru_direction_ref(x, lp["wih"][0], lp["whh"][0], lp["bih"][0], lp["bhh"][0], False)
        ob = _gru_direction_ref(x, lp["wih"][1], lp["whh"][1], lp["bih"][1], lp["bhh"][1], True)
        x = jnp.concatenate([of, ob], axis=-1)
    hp = params["head"]
    h = jnp.maximum(jnp.dot(x, hp["w1"], precision=lax.Precision.HIGHEST) + hp["b1"][0], 0.0)
    y = jnp.dot(h, hp["w2"], precision=lax.Precision.HIGHEST) + hp["b2"][0] + x
    mean = y.mean(axis=-1, keepdims=True)
    var = ((y - mean) ** 2).mean(axis=-1, keepdims=True)
    yn = (y - mean) / jnp.sqrt(var + LN_EPS) * hp["ln_g"][0] + hp["ln_b"][0]
    return jnp.dot(yn, hp["w3"], precision=lax.Precision.HIGHEST) + hp["b3"][0]


def init_params(key, num_features, hidden, num_layers):
    def u(k, shape, scale):
        return jax.random.uniform(k, shape, jnp.float32, minval=-scale, maxval=scale)

    keys = iter(jax.random.split(key, num_layers * 4 + 8))
    k_h = 1.0 / float(hidden) ** 0.5
    gru = []
    d_in = num_features
    for _ in range(num_layers):
        gru.append({
            # Stacked (direction, gate, ...) with gate order [r, z, n]; weights
            # already transposed for x @ W.
            "wih": u(next(keys), (2, 3, d_in, hidden), k_h),
            "whh": u(next(keys), (2, 3, hidden, hidden), k_h),
            "bih": u(next(keys), (2, 3, 1, hidden), k_h),
            "bhh": u(next(keys), (2, 3, 1, hidden), k_h),
        })
        d_in = 2 * hidden

    F = 2 * hidden
    k_f = 1.0 / float(F) ** 0.5
    head = {
        "w1": u(next(keys), (F, F), k_f), "b1": u(next(keys), (1, F), k_f),
        "w2": u(next(keys), (F, F), k_f), "b2": u(next(keys), (1, F), k_f),
        "ln_g": (1.0 + 0.01 * jnp.arange(F, dtype=jnp.float32)).reshape(1, F),
        "ln_b": (0.01 * jnp.arange(F, dtype=jnp.float32)).reshape(1, F),
        "w3": u(next(keys), (F, num_features), k_f),
        "b3": u(next(keys), (1, num_features), k_f),
    }
    return {"gru": gru, "head": head}


if __name__ == "__main__":
    # Small shapes consistent with the module:
    # seq T=8, batch N=2, num_features=16, gru_hidden_size=32, num_gru_layers=2.
    T, N, num_features, hidden, num_layers = 8, 2, 16, 32, 2

    key = jax.random.PRNGKey(0)
    k_in, k_par = jax.random.split(key)
    inputs = jax.random.normal(k_in, (T, N, num_features), dtype=jnp.float32)
    params = init_params(k_par, num_features, hidden, num_layers)

    out = jax.jit(tds_gru_encoder)(inputs, params)
    out = jax.block_until_ready(out)
    assert out.shape == (T, N, num_features)

    ref = encoder_reference(inputs, params)
    max_err = float(jnp.max(jnp.abs(out - ref)))
    assert max_err < 2e-2, f"max abs err vs reference: {max_err}"

    print("KERNEL_OK")
</pallas_src>

<mosaic_0001>
module attributes {stable_mosaic.version = 11 : i64} {
  func.func @_bigru_kernel(%arg0: i32, %arg1: memref<8x3x2x32xf32, #tpu.memory_space<vmem>>, %arg2: memref<8x3x2x32xf32, #tpu.memory_space<vmem>>, %arg3: memref<6x32x32xf32, #tpu.memory_space<vmem>>, %arg4: memref<6x1x32xf32, #tpu.memory_space<vmem>>, %arg5: memref<8x2x64xf32, #tpu.memory_space<vmem>>) attributes {dimension_semantics = [#tpu.dimension_semantics<arbitrary>], iteration_bounds = array<i64: 1>, scalar_prefetch = 0 : i64, scratch_operands = 0 : i64, tpu.core_type = #tpu.core_type<tc>, window_params = [{pipeline_mode = #tpu.pipeline_mode<synchronous>, transform_indices = @transform_0, window_bounds = array<i64: 8, 3, 2, 32>}, {pipeline_mode = #tpu.pipeline_mode<synchronous>, transform_indices = @transform_1, window_bounds = array<i64: 8, 3, 2, 32>}, {pipeline_mode = #tpu.pipeline_mode<synchronous>, transform_indices = @transform_2, window_bounds = array<i64: 6, 32, 32>}, {pipeline_mode = #tpu.pipeline_mode<synchronous>, transform_indices = @transform_3, window_bounds = array<i64: 6, 1, 32>}, {pipeline_mode = #tpu.pipeline_mode<synchronous>, transform_indices = @transform_4, window_bounds = array<i64: 8, 2, 64>}]} {
    %c0 = arith.constant 0 : index
    %c0_0 = arith.constant 0 : index
    %c0_1 = arith.constant 0 : index
    %0 = vector.load %arg3[%c0, %c0_0, %c0_1] : memref<6x32x32xf32, #tpu.memory_space<vmem>>, vector<1x32x32xf32>
    %1 = vector.shape_cast %0 : vector<1x32x32xf32> to vector<32x32xf32>
    %c1 = arith.constant 1 : index
    %c0_2 = arith.constant 0 : index
    %c0_3 = arith.constant 0 : index
    %2 = vector.load %arg3[%c1, %c0_2, %c0_3] : memref<6x32x32xf32, #tpu.memory_space<vmem>>, vector<1x32x32xf32>
    %3 = vector.shape_cast %2 : vector<1x32x32xf32> to vector<32x32xf32>
    %c2 = arith.constant 2 : index
    %c0_4 = arith.constant 0 : index
    %c0_5 = arith.constant 0 : index
    %4 = vector.load %arg3[%c2, %c0_4, %c0_5] : memref<6x32x32xf32, #tpu.memory_space<vmem>>, vector<1x32x32xf32>
    %5 = vector.shape_cast %4 : vector<1x32x32xf32> to vector<32x32xf32>
    %c3 = arith.constant 3 : index
    %c0_6 = arith.constant 0 : index
    %c0_7 = arith.constant 0 : index
    %6 = vector.load %arg3[%c3, %c0_6, %c0_7] : memref<6x32x32xf32, #tpu.memory_space<vmem>>, vector<1x32x32xf32>
    %7 = vector.shape_cast %6 : vector<1x32x32xf32> to vector<32x32xf32>
    %c4 = arith.constant 4 : index
    %c0_8 = arith.constant 0 : index
    %c0_9 = arith.constant 0 : index
    %8 = vector.load %arg3[%c4, %c0_8, %c0_9] : memref<6x32x32xf32, #tpu.memory_space<vmem>>, vector<1x32x32xf32>
    %9 = vector.shape_cast %8 : vector<1x32x32xf32> to vector<32x32xf32>
    %c5 = arith.constant 5 : index
    %c0_10 = arith.constant 0 : index
    %c0_11 = arith.constant 0 : index
    %10 = vector.load %arg3[%c5, %c0_10, %c0_11] : memref<6x32x32xf32, #tpu.memory_space<vmem>>, vector<1x32x32xf32>
    %11 = vector.shape_cast %10 : vector<1x32x32xf32> to vector<32x32xf32>
    %c0_12 = arith.constant 0 : index
    %c0_13 = arith.constant 0 : index
    %c0_14 = arith.constant 0 : index
    %12 = vector.load %arg4[%c0_12, %c0_13, %c0_14] : memref<6x1x32xf32, #tpu.memory_space<vmem>>, vector<1x1x32xf32>
    %13 = vector.shape_cast %12 : vector<1x1x32xf32> to vector<1x32xf32>
    %c1_15 = arith.constant 1 : index
    %c0_16 = arith.constant 0 : index
    %c0_17 = arith.constant 0 : index
    %14 = vector.load %arg4[%c1_15, %c0_16, %c0_17] : memref<6x1x32xf32, #tpu.memory_space<vmem>>, vector<1x1x32xf32>
    %15 = vector.shape_cast %14 : vector<1x1x32xf32> to vector<1x32xf32>
    %c2_18 = arith.constant 2 : index
    %c0_19 = arith.constant 0 : index
    %c0_20 = arith.constant 0 : index
    %16 = vector.load %arg4[%c2_18, %c0_19, %c0_20] : memref<6x1x32xf32, #tpu.memory_space<vmem>>, vector<1x1x32xf32>
    %17 = vector.shape_cast %16 : vector<1x1x32xf32> to vector<1x32xf32>
    %c3_21 = arith.constant 3 : index
    %c0_22 = arith.constant 0 : index
    %c0_23 = arith.constant 0 : index
    %18 = vector.load %arg4[%c3_21, %c0_22, %c0_23] : memref<6x1x32xf32, #tpu.memory_space<vmem>>, vector<1x1x32xf32>
    %19 = vector.shape_cast %18 : vector<1x1x32xf32> to vector<1x32xf32>
    %c4_24 = arith.constant 4 : index
    %c0_25 = arith.constant 0 : index
    %c0_26 = arith.constant 0 : index
    %20 = vector.load %arg4[%c4_24, %c0_25, %c0_26] : memref<6x1x32xf32, #tpu.memory_space<vmem>>, vector<1x1x32xf32>
    %21 = vector.shape_cast %20 : vector<1x1x32xf32> to vector<1x32xf32>
    %c5_27 = arith.constant 5 : index
    %c0_28 = arith.constant 0 : index
    %c0_29 = arith.constant 0 : index
    %22 = vector.load %arg4[%c5_27, %c0_28, %c0_29] : memref<6x1x32xf32, #tpu.memory_space<vmem>>, vector<1x1x32xf32>
    %23 = vector.shape_cast %22 : vector<1x1x32xf32> to vector<1x32xf32>
    %cst = arith.constant 0.000000e+00 : f32
    %24 = vector.broadcast %cst : f32 to vector<2x32xf32>
    %c0_i32 = arith.constant 0 : i32
    %c8_i32 = arith.constant 8 : i32
    %25 = arith.addi %c0_i32, %c8_i32 : i32
    %c1_i32 = arith.constant 1 : i32
    %26:2 = scf.for %arg6 = %c0_i32 to %25 step %c1_i32 iter_args(%arg7 = %24, %arg8 = %24) -> (vector<2x32xf32>, vector<2x32xf32>)  : i32 {
      %c7_i32 = arith.constant 7 : i32
      %27 = arith.subi %c7_i32, %arg6 : i32
      %28 = arith.index_cast %arg6 : i32 to index
      %c0_31 = arith.constant 0 : index
      %c0_32 = arith.constant 0 : index
      %c0_33 = arith.constant 0 : index
      %29 = vector.load %arg1[%28, %c0_31, %c0_32, %c0_33] : memref<8x3x2x32xf32, #tpu.memory_space<vmem>>, vector<1x3x2x32xf32>
      %30 = vector.shape_cast %29 : vector<1x3x2x32xf32> to vector<3x2x32xf32>
      %31 = arith.index_cast %27 : i32 to index
      %c0_34 = arith.constant 0 : index
      %c0_35 = arith.constant 0 : index
      %c0_36 = arith.constant 0 : index
      %32 = vector.load %arg2[%31, %c0_34, %c0_35, %c0_36] : memref<8x3x2x32xf32, #tpu.memory_space<vmem>>, vector<1x3x2x32xf32>
      %33 = vector.shape_cast %32 : vector<1x3x2x32xf32> to vector<3x2x32xf32>
      %cst_37 = arith.constant dense<0.000000e+00> : vector<2x32xf32>
      %34 = tpu.matmul %arg7, %1, %cst_37 {dimension_numbers = #tpu.dot_dimension_numbers<[1], [0], [0], [1], [0, 0, 1, 1], [], []>} : vector<2x32xf32>, vector<32x32xf32>, vector<2x32xf32> -> vector<2x32xf32>
      %35 = vector.broadcast %13 : vector<1x32xf32> to vector<2x32xf32>
      %36 = arith.addf %34, %35 : vector<2x32xf32>
      %cst_38 = arith.constant dense<0.000000e+00> : vector<2x32xf32>
      %37 = tpu.matmul %arg7, %3, %cst_38 {dimension_numbers = #tpu.dot_dimension_numbers<[1], [0], [0], [1], [0, 0, 1, 1], [], []>} : vector<2x32xf32>, vector<32x32xf32>, vector<2x32xf32> -> vector<2x32xf32>
      %38 = vector.broadcast %15 : vector<1x32xf32> to vector<2x32xf32>
      %39 = arith.addf %37, %38 : vector<2x32xf32>
      %cst_39 = arith.constant dense<0.000000e+00> : vector<2x32xf32>
      %40 = tpu.matmul %arg7, %5, %cst_39 {dimension_numbers = #tpu.dot_dimension_numbers<[1], [0], [0], [1], [0, 0, 1, 1], [], []>} : vector<2x32xf32>, vector<32x32xf32>, vector<2x32xf32> -> vector<2x32xf32>
      %41 = vector.broadcast %17 : vector<1x32xf32> to vector<2x32xf32>
      %42 = arith.addf %40, %41 : vector<2x32xf32>
      %cst_40 = arith.constant dense<0.000000e+00> : vector<2x32xf32>
      %43 = tpu.matmul %arg8, %7, %cst_40 {dimension_numbers = #tpu.dot_dimension_numbers<[1], [0], [0], [1], [0, 0, 1, 1], [], []>} : vector<2x32xf32>, vector<32x32xf32>, vector<2x32xf32> -> vector<2x32xf32>
      %44 = vector.broadcast %19 : vector<1x32xf32> to vector<2x32xf32>
      %45 = arith.addf %43, %44 : vector<2x32xf32>
      %cst_41 = arith.constant dense<0.000000e+00> : vector<2x32xf32>
      %46 = tpu.matmul %arg8, %9, %cst_41 {dimension_numbers = #tpu.dot_dimension_numbers<[1], [0], [0], [1], [0, 0, 1, 1], [], []>} : vector<2x32xf32>, vector<32x32xf32>, vector<2x32xf32> -> vector<2x32xf32>
      %47 = vector.broadcast %21 : vector<1x32xf32> to vector<2x32xf32>
      %48 = arith.addf %46, %47 : vector<2x32xf32>
      %cst_42 = arith.constant dense<0.000000e+00> : vector<2x32xf32>
      %49 = tpu.matmul %arg8, %11, %cst_42 {dimension_numbers = #tpu.dot_dimension_numbers<[1], [0], [0], [1], [0, 0, 1, 1], [], []>} : vector<2x32xf32>, vector<32x32xf32>, vector<2x32xf32> -> vector<2x32xf32>
      %50 = vector.broadcast %23 : vector<1x32xf32> to vector<2x32xf32>
      %51 = arith.addf %49, %50 : vector<2x32xf32>
      %52 = vector.extract_strided_slice %30 {offsets = [0, 0, 0], sizes = [1, 2, 32], strides = [1, 1, 1]} : vector<3x2x32xf32> to vector<1x2x32xf32>
      %53 = vector.shape_cast %52 : vector<1x2x32xf32> to vector<2x32xf32>
      %54 = arith.addf %53, %36 : vector<2x32xf32>
      %cst_43 = arith.constant 0.000000e+00 : f32
      %55 = vector.broadcast %cst_43 : f32 to vector<2x32xf32>
      %56 = arith.subf %55, %54 : vector<2x32xf32>
      %57 = math.exp %56 : vector<2x32xf32>
      %cst_44 = arith.constant 1.000000e+00 : f32
      %58 = vector.broadcast %cst_44 : f32 to vector<2x32xf32>
      %59 = arith.addf %58, %57 : vector<2x32xf32>
      %60 = tpu.reciprocal %59 {approx = true} : vector<2x32xf32> -> vector<2x32xf32>
      %61 = vector.extract_strided_slice %30 {offsets = [1, 0, 0], sizes = [1, 2, 32], strides = [1, 1, 1]} : vector<3x2x32xf32> to vector<1x2x32xf32>
      %62 = vector.shape_cast %61 : vector<1x2x32xf32> to vector<2x32xf32>
      %63 = arith.addf %62, %39 : vector<2x32xf32>
      %cst_45 = arith.constant 0.000000e+00 : f32
      %64 = vector.broadcast %cst_45 : f32 to vector<2x32xf32>
      %65 = arith.subf %64, %63 : vector<2x32xf32>
      %66 = math.exp %65 : vector<2x32xf32>
      %cst_46 = arith.constant 1.000000e+00 : f32
      %67 = vector.broadcast %cst_46 : f32 to vector<2x32xf32>
      %68 = arith.addf %67, %66 : vector<2x32xf32>
      %69 = tpu.reciprocal %68 {approx = true} : vector<2x32xf32> -> vector<2x32xf32>
      %70 = vector.extract_strided_slice %30 {offsets = [2, 0, 0], sizes = [1, 2, 32], strides = [1, 1, 1]} : vector<3x2x32xf32> to vector<1x2x32xf32>
      %71 = vector.shape_cast %70 : vector<1x2x32xf32> to vector<2x32xf32>
      %72 = arith.mulf %60, %42 : vector<2x32xf32>
      %73 = arith.addf %71, %72 : vector<2x32xf32>
      %74 = math.tanh %73 : vector<2x32xf32>
      %cst_47 = arith.constant 1.000000e+00 : f32
      %75 = vector.broadcast %cst_47 : f32 to vector<2x32xf32>
      %76 = arith.subf %75, %69 : vector<2x32xf32>
      %77 = arith.mulf %76, %74 : vector<2x32xf32>
      %78 = arith.mulf %69, %arg7 : vector<2x32xf32>
      %79 = arith.addf %77, %78 : vector<2x32xf32>
      %80 = vector.extract_strided_slice %33 {offsets = [0, 0, 0], sizes = [1, 2, 32], strides = [1, 1, 1]} : vector<3x2x32xf32> to vector<1x2x32xf32>
      %81 = vector.shape_cast %80 : vector<1x2x32xf32> to vector<2x32xf32>
      %82 = arith.addf %81, %45 : vector<2x32xf32>
      %cst_48 = arith.constant 0.000000e+00 : f32
      %83 = vector.broadcast %cst_48 : f32 to vector<2x32xf32>
      %84 = arith.subf %83, %82 : vector<2x32xf32>
      %85 = math.exp %84 : vector<2x32xf32>
      %cst_49 = arith.constant 1.000000e+00 : f32
      %86 = vector.broadcast %cst_49 : f32 to vector<2x32xf32>
      %87 = arith.addf %86, %85 : vector<2x32xf32>
      %88 = tpu.reciprocal %87 {approx = true} : vector<2x32xf32> -> vector<2x32xf32>
      %89 = vector.extract_strided_slice %33 {offsets = [1, 0, 0], sizes = [1, 2, 32], strides = [1, 1, 1]} : vector<3x2x32xf32> to vector<1x2x32xf32>
      %90 = vector.shape_cast %89 : vector<1x2x32xf32> to vector<2x32xf32>
      %91 = arith.addf %90, %48 : vector<2x32xf32>
      %cst_50 = arith.constant 0.000000e+00 : f32
      %92 = vector.broadcast %cst_50 : f32 to vector<2x32xf32>
      %93 = arith.subf %92, %91 : vector<2x32xf32>
      %94 = math.exp %93 : vector<2x32xf32>
      %cst_51 = arith.constant 1.000000e+00 : f32
      %95 = vector.broadcast %cst_51 : f32 to vector<2x32xf32>
      %96 = arith.addf %95, %94 : vector<2x32xf32>
      %97 = tpu.reciprocal %96 {approx = true} : vector<2x32xf32> -> vector<2x32xf32>
      %98 = vector.extract_strided_slice %33 {offsets = [2, 0, 0], sizes = [1, 2, 32], strides = [1, 1, 1]} : vector<3x2x32xf32> to vector<1x2x32xf32>
      %99 = vector.shape_cast %98 : vector<1x2x32xf32> to vector<2x32xf32>
      %100 = arith.mulf %88, %51 : vector<2x32xf32>
      %101 = arith.addf %99, %100 : vector<2x32xf32>
      %102 = math.tanh %101 : vector<2x32xf32>
      %cst_52 = arith.constant 1.000000e+00 : f32
      %103 = vector.broadcast %cst_52 : f32 to vector<2x32xf32>
      %104 = arith.subf %103, %97 : vector<2x32xf32>
      %105 = arith.mulf %104, %102 : vector<2x32xf32>
      %106 = arith.mulf %97, %arg8 : vector<2x32xf32>
      %107 = arith.addf %105, %106 : vector<2x32xf32>
      %108 = arith.index_cast %arg6 : i32 to index
      %c0_53 = arith.constant 0 : index
      %c0_54 = arith.constant 0 : index
      %109 = vector.load %arg5[%108, %c0_53, %c0_54] : memref<8x2x64xf32, #tpu.memory_space<vmem>>, vector<1x2x32xf32>
      %110 = vector.shape_cast %109 : vector<1x2x32xf32> to vector<2x32xf32>
      %111 = vector.shape_cast %79 : vector<2x32xf32> to vector<1x2x32xf32>
      tpu.vector_store %arg5[%108, %c0_53, %c0_54], %111 {strides = array<i32>} : memref<8x2x64xf32, #tpu.memory_space<vmem>>, vector<1x2x32xf32>,
      %112 = arith.index_cast %27 : i32 to index
      %c0_55 = arith.constant 0 : index
      %c32 = arith.constant 32 : index
      %113 = vector.load %arg5[%112, %c0_55, %c32] : memref<8x2x64xf32, #tpu.memory_space<vmem>>, vector<1x2x32xf32>
      %114 = vector.shape_cast %113 : vector<1x2x32xf32> to vector<2x32xf32>
      %115 = vector.shape_cast %107 : vector<2x32xf32> to vector<1x2x32xf32>
      tpu.vector_store %arg5[%112, %c0_55, %c32], %115 {strides = array<i32>} : memref<8x2x64xf32, #tpu.memory_space<vmem>>, vector<1x2x32xf32>,
      scf.yield %79, %107 : vector<2x32xf32>, vector<2x32xf32>
    }
    %c8_i32_30 = arith.constant 8 : i32
    return
  }
  func.func @transform_0(%arg0: i32) -> (i32, i32, i32, i32) {
    %c0_i32 = arith.constant 0 : i32
    %c0_i32_0 = arith.constant 0 : i32
    %c0_i32_1 = arith.constant 0 : i32
    %c0_i32_2 = arith.constant 0 : i32
    %c0_i32_3 = arith.constant 0 : i32
    return %c0_i32, %c0_i32_0, %c0_i32_1, %c0_i32_2 : i32, i32, i32, i32
  }
  func.func @transform_1(%arg0: i32) -> (i32, i32, i32, i32) {
    %c0_i32 = arith.constant 0 : i32
    %c0_i32_0 = arith.constant 0 : i32
    %c0_i32_1 = arith.constant 0 : i32
    %c0_i32_2 = arith.constant 0 : i32
    %c0_i32_3 = arith.constant 0 : i32
    return %c0_i32, %c0_i32_0, %c0_i32_1, %c0_i32_2 : i32, i32, i32, i32
  }
  func.func @transform_2(%arg0: i32) -> (i32, i32, i32) {
    %c0_i32 = arith.constant 0 : i32
    %c0_i32_0 = arith.constant 0 : i32
    %c0_i32_1 = arith.constant 0 : i32
    %c0_i32_2 = arith.constant 0 : i32
    return %c0_i32, %c0_i32_0, %c0_i32_1 : i32, i32, i32
  }
  func.func @transform_3(%arg0: i32) -> (i32, i32, i32) {
    %c0_i32 = arith.constant 0 : i32
    %c0_i32_0 = arith.constant 0 : i32
    %c0_i32_1 = arith.constant 0 : i32
    %c0_i32_2 = arith.constant 0 : i32
    return %c0_i32, %c0_i32_0, %c0_i32_1 : i32, i32, i32
  }
  func.func @transform_4(%arg0: i32) -> (i32, i32, i32) {
    %c0_i32 = arith.constant 0 : i32
    %c0_i32_0 = arith.constant 0 : i32
    %c0_i32_1 = arith.constant 0 : i32
    %c0_i32_2 = arith.constant 0 : i32
    return %c0_i32, %c0_i32_0, %c0_i32_1 : i32, i32, i32
  }
}

module attributes {stable_mosaic.version = 11 : i64} {
  func.func @_tds_head_kernel(%arg0: i32, %arg1: memref<16x64xf32, #tpu.memory_space<vmem>>, %arg2: memref<64x64xf32, #tpu.memory_space<vmem>>, %arg3: memref<1x64xf32, #tpu.memory_space<vmem>>, %arg4: memref<64x64xf32, #tpu.memory_space<vmem>>, %arg5: memref<1x64xf32, #tpu.memory_space<vmem>>, %arg6: memref<1x64xf32, #tpu.memory_space<vmem>>, %arg7: memref<1x64xf32, #tpu.memory_space<vmem>>, %arg8: memref<64x128xf32, #tpu.memory_space<vmem>>, %arg9: memref<1x128xf32, #tpu.memory_space<vmem>>, %arg10: memref<16x128xf32, #tpu.memory_space<vmem>>) attributes {dimension_semantics = [#tpu.dimension_semantics<parallel>], iteration_bounds = array<i64: 1>, scalar_prefetch = 0 : i64, scratch_operands = 0 : i64, tpu.core_type = #tpu.core_type<tc>, window_params = [{transform_indices = @transform_0, window_bounds = array<i64: 16, 64>}, {pipeline_mode = #tpu.pipeline_mode<synchronous>, transform_indices = @transform_1, window_bounds = array<i64: 64, 64>}, {pipeline_mode = #tpu.pipeline_mode<synchronous>, transform_indices = @transform_2, window_bounds = array<i64: 1, 64>}, {pipeline_mode = #tpu.pipeline_mode<synchronous>, transform_indices = @transform_3, window_bounds = array<i64: 64, 64>}, {pipeline_mode = #tpu.pipeline_mode<synchronous>, transform_indices = @transform_4, window_bounds = array<i64: 1, 64>}, {pipeline_mode = #tpu.pipeline_mode<synchronous>, transform_indices = @transform_5, window_bounds = array<i64: 1, 64>}, {pipeline_mode = #tpu.pipeline_mode<synchronous>, transform_indices = @transform_6, window_bounds = array<i64: 1, 64>}, {pipeline_mode = #tpu.pipeline_mode<synchronous>, transform_indices = @transform_7, window_bounds = array<i64: 64, 128>}, {pipeline_mode = #tpu.pipeline_mode<synchronous>, transform_indices = @transform_8, window_bounds = array<i64: 1, 128>}, {transform_indices = @transform_9, window_bounds = array<i64: 16, 128>}]} {
    %c0 = arith.constant 0 : index
    %c0_0 = arith.constant 0 : index
    %0 = vector.load %arg1[%c0, %c0_0] : memref<16x64xf32, #tpu.memory_space<vmem>>, vector<16x64xf32>
    %c0_1 = arith.constant 0 : index
    %c0_2 = arith.constant 0 : index
    %1 = vector.load %arg2[%c0_1, %c0_2] : memref<64x64xf32, #tpu.memory_space<vmem>>, vector<64x64xf32>
    %cst = arith.constant dense<0.000000e+00> : vector<16x64xf32>
    %2 = tpu.matmul %0, %1, %cst {dimension_numbers = #tpu.dot_dimension_numbers<[1], [0], [0], [1], [0, 0, 1, 1], [], []>} : vector<16x64xf32>, vector<64x64xf32>, vector<16x64xf32> -> vector<16x64xf32>
    %c0_3 = arith.constant 0 : index
    %c0_4 = arith.constant 0 : index
    %3 = vector.load %arg3[%c0_3, %c0_4] : memref<1x64xf32, #tpu.memory_space<vmem>>, vector<1x64xf32>
    %4 = vector.broadcast %3 : vector<1x64xf32> to vector<16x64xf32>
    %5 = arith.addf %2, %4 : vector<16x64xf32>
    %cst_5 = arith.constant 0.000000e+00 : f32
    %6 = vector.broadcast %cst_5 : f32 to vector<16x64xf32>
    %7 = arith.maximumf %5, %6 : vector<16x64xf32>
    %c0_6 = arith.constant 0 : index
    %c0_7 = arith.constant 0 : index
    %8 = vector.load %arg4[%c0_6, %c0_7] : memref<64x64xf32, #tpu.memory_space<vmem>>, vector<64x64xf32>
    %cst_8 = arith.constant dense<0.000000e+00> : vector<16x64xf32>
    %9 = tpu.matmul %7, %8, %cst_8 {dimension_numbers = #tpu.dot_dimension_numbers<[1], [0], [0], [1], [0, 0, 1, 1], [], []>} : vector<16x64xf32>, vector<64x64xf32>, vector<16x64xf32> -> vector<16x64xf32>
    %c0_9 = arith.constant 0 : index
    %c0_10 = arith.constant 0 : index
    %10 = vector.load %arg5[%c0_9, %c0_10] : memref<1x64xf32, #tpu.memory_space<vmem>>, vector<1x64xf32>
    %11 = vector.broadcast %10 : vector<1x64xf32> to vector<16x64xf32>
    %12 = arith.addf %9, %11 : vector<16x64xf32>
    %13 = arith.addf %12, %0 : vector<16x64xf32>
    %cst_11 = arith.constant dense<0.000000e+00> : vector<16xf32>
    %14 = vector.multi_reduction <add>, %13, %cst_11 [1] : vector<16x64xf32> to vector<16xf32>
    %15 = vector.shape_cast %14 : vector<16xf32> to vector<16x1xf32>
    %cst_12 = arith.constant 6.400000e+01 : f32
    %16 = vector.broadcast %cst_12 : f32 to vector<16x1xf32>
    %17 = arith.divf %15, %16 : vector<16x1xf32>
    %18 = vector.broadcast %17 : vector<16x1xf32> to vector<16x64xf32>
    %19 = arith.subf %13, %18 : vector<16x64xf32>
    %20 = arith.mulf %19, %19 : vector<16x64xf32>
    %cst_13 = arith.constant dense<0.000000e+00> : vector<16xf32>
    %21 = vector.multi_reduction <add>, %20, %cst_13 [1] : vector<16x64xf32> to vector<16xf32>
    %22 = vector.shape_cast %21 : vector<16xf32> to vector<16x1xf32>
    %cst_14 = arith.constant 6.400000e+01 : f32
    %23 = vector.broadcast %cst_14 : f32 to vector<16x1xf32>
    %24 = arith.divf %22, %23 : vector<16x1xf32>
    %cst_15 = arith.constant 9.99999974E-6 : f32
    %25 = vector.broadcast %cst_15 : f32 to vector<16x1xf32>
    %26 = arith.addf %24, %25 : vector<16x1xf32>
    %27 = math.rsqrt %26 : vector<16x1xf32>
    %28 = vector.broadcast %27 : vector<16x1xf32> to vector<16x64xf32>
    %29 = arith.mulf %19, %28 : vector<16x64xf32>
    %c0_16 = arith.constant 0 : index
    %c0_17 = arith.constant 0 : index
    %30 = vector.load %arg6[%c0_16, %c0_17] : memref<1x64xf32, #tpu.memory_space<vmem>>, vector<1x64xf32>
    %31 = vector.broadcast %30 : vector<1x64xf32> to vector<16x64xf32>
    %32 = arith.mulf %29, %31 : vector<16x64xf32>
    %c0_18 = arith.constant 0 : index
    %c0_19 = arith.constant 0 : index
    %33 = vector.load %arg7[%c0_18, %c0_19] : memref<1x64xf32, #tpu.memory_space<vmem>>, vector<1x64xf32>
    %34 = vector.broadcast %33 : vector<1x64xf32> to vector<16x64xf32>
    %35 = arith.addf %32, %34 : vector<16x64xf32>
    %c0_20 = arith.constant 0 : index
    %c0_21 = arith.constant 0 : index
    %36 = vector.load %arg8[%c0_20, %c0_21] : memref<64x128xf32, #tpu.memory_space<vmem>>, vector<64x128xf32>
    %cst_22 = arith.constant dense<0.000000e+00> : vector<16x128xf32>
    %37 = tpu.matmul %35, %36, %cst_22 {dimension_numbers = #tpu.dot_dimension_numbers<[1], [0], [0], [1], [0, 0, 1, 1], [], []>} : vector<16x64xf32>, vector<64x128xf32>, vector<16x128xf32> -> vector<16x128xf32>
    %c0_23 = arith.constant 0 : index
    %c0_24 = arith.constant 0 : index
    %38 = vector.load %arg9[%c0_23, %c0_24] : memref<1x128xf32, #tpu.memory_space<vmem>>, vector<1x128xf32>
    %39 = vector.broadcast %38 : vector<1x128xf32> to vector<16x128xf32>
    %40 = arith.addf %37, %39 : vector<16x128xf32>
    %c0_25 = arith.constant 0 : index
    %c0_26 = arith.constant 0 : index
    %41 = vector.load %arg10[%c0_25, %c0_26] : memref<16x128xf32, #tpu.memory_space<vmem>>, vector<16x128xf32>
    tpu.vector_store %arg10[%c0_25, %c0_26], %40 {strides = array<i32>} : memref<16x128xf32, #tpu.memory_space<vmem>>, vector<16x128xf32>,
    return
  }
  func.func @transform_0(%arg0: i32) -> (i32, i32) {
    %c0_i32 = arith.constant 0 : i32
    %c0_i32_0 = arith.constant 0 : i32
    return %arg0, %c0_i32 : i32, i32
  }
  func.func @transform_1(%arg0: i32) -> (i32, i32) {
    %c0_i32 = arith.constant 0 : i32
    %c0_i32_0 = arith.constant 0 : i32
    %c0_i32_1 = arith.constant 0 : i32
    return %c0_i32, %c0_i32_0 : i32, i32
  }
  func.func @transform_2(%arg0: i32) -> (i32, i32) {
    %c0_i32 = arith.constant 0 : i32
    %c0_i32_0 = arith.constant 0 : i32
    %c0_i32_1 = arith.constant 0 : i32
    return %c0_i32, %c0_i32_0 : i32, i32
  }
  func.func @transform_3(%arg0: i32) -> (i32, i32) {
    %c0_i32 = arith.constant 0 : i32
    %c0_i32_0 = arith.constant 0 : i32
    %c0_i32_1 = arith.constant 0 : i32
    return %c0_i32, %c0_i32_0 : i32, i32
  }
  func.func @transform_4(%arg0: i32) -> (i32, i32) {
    %c0_i32 = arith.constant 0 : i32
    %c0_i32_0 = arith.constant 0 : i32
    %c0_i32_1 = arith.constant 0 : i32
    return %c0_i32, %c0_i32_0 : i32, i32
  }
  func.func @transform_5(%arg0: i32) -> (i32, i32) {
    %c0_i32 = arith.constant 0 : i32
    %c0_i32_0 = arith.constant 0 : i32
    %c0_i32_1 = arith.constant 0 : i32
    return %c0_i32, %c0_i32_0 : i32, i32
  }
  func.func @transform_6(%arg0: i32) -> (i32, i32) {
    %c0_i32 = arith.constant 0 : i32
    %c0_i32_0 = arith.constant 0 : i32
    %c0_i32_1 = arith.constant 0 : i32
    return %c0_i32, %c0_i32_0 : i32, i32
  }
  func.func @transform_7(%arg0: i32) -> (i32, i32) {
    %c0_i32 = arith.constant 0 : i32
    %c0_i32_0 = arith.constant 0 : i32
    %c0_i32_1 = arith.constant 0 : i32
    return %c0_i32, %c0_i32_0 : i32, i32
  }
  func.func @transform_8(%arg0: i32) -> (i32, i32) {
    %c0_i32 = arith.constant 0 : i32
    %c0_i32_0 = arith.constant 0 : i32
    %c0_i32_1 = arith.constant 0 : i32
    return %c0_i32, %c0_i32_0 : i32, i32
  }
  func.func @transform_9(%arg0: i32) -> (i32, i32) {
    %c0_i32 = arith.constant 0 : i32
    %c0_i32_0 = arith.constant 0 : i32
    return %arg0, %c0_i32 : i32, i32
  }
}

</mosaic_0001>

<llo_original>
// kernel: tds_gru_encoder.5
$region0: #{tds_gru_encoder.5}
  #allocation0 [shape = 'u32[]', space=smem, size = 0x4, offset = 0x4, fixed_abs, tag = 'smem constant byte address 0x4 - core index']
  #allocation1 [shape = 'u32[144,128]{1,0:T(1,128)}', space=vmem, size = 0x12000, scoped, tag = 'internal scratch']
  %s0 = inlined_call_operand.vmem [shape: f32[16,64], index: 0, kind: input, shape index: {}]
  %s1 = inlined_call_operand.vmem [shape: f32[64,64], index: 1, kind: input, shape index: {}]
  %s2 = inlined_call_operand.vmem [shape: f32[1,64], index: 2, kind: input, shape index: {}]
  %s3 = inlined_call_operand.vmem [shape: f32[64,64], index: 3, kind: input, shape index: {}]
  %s4 = inlined_call_operand.vmem [shape: f32[1,64], index: 4, kind: input, shape index: {}]
  %s5 = inlined_call_operand.vmem [shape: f32[1,64], index: 5, kind: input, shape index: {}]
  %s6 = inlined_call_operand.vmem [shape: f32[1,64], index: 6, kind: input, shape index: {}]
  %s7 = inlined_call_operand.vmem [shape: f32[64,128], index: 7, kind: input, shape index: {}]
  %s8 = inlined_call_operand.vmem [shape: f32[1,128], index: 8, kind: input, shape index: {}]
  %s9 = inlined_call_operand.hbm [shape: f32[16,128], index: 9, kind: output, shape index: {}]
  %s10 = sld [smem:[#allocation0]]
  $region46: #{tds_gru_encoder.5} parent=0
    _
  %s12 = ssub.s32 1, %s10
  %s13 = scalar_select 0, %s12, %s10
  $region1: #{tds_gru_encoder.5} parent=0
    #allocation2 [shape = 'u8[8192]{0}', space=vmem, size = 0x2000, scoped, tag = 'output window, operand 0, single buffered']
    #allocation3 [shape = 's32[1]{0}', space=sflag, size = 0x4, scoped, tag = 'scoped memory for tds_gru_encoder.5']
    %14 = vsyncpa [#allocation3], 0
    // Predicated region
    $region2: #{tds_gru_encoder.5} parent=1 // pred_check
      _
    $region3: #{tds_gru_encoder.5} parent=1 // pred_check_branch
      %16 = sbr.rel (0) target = $region5
    $region4: #{tds_gru_encoder.5} parent=1 // pred_region
      _
    $region5: #{tds_gru_encoder.5} parent=1 // pred_fallthru
      _
    // Predicated region
    $region6: #{tds_gru_encoder.5} parent=1 // pred_check
      _
    $region7: #{tds_gru_encoder.5} parent=1 // pred_check_branch
      %18 = sbr.rel (0) target = $region9
    $region8: #{tds_gru_encoder.5} parent=1 // pred_region
      _
    $region9: #{tds_gru_encoder.5} parent=1 // pred_fallthru
      _
    // Predicated region
    $region10: #{tds_gru_encoder.5} parent=1 // pred_check
      _
    $region11: #{tds_gru_encoder.5} parent=1 // pred_check_branch
      %20 = sbr.rel (0) target = $region13
    $region12: #{tds_gru_encoder.5} parent=1 // pred_region
      _
    $region13: #{tds_gru_encoder.5} parent=1 // pred_fallthru
      _
    // Predicated region
    $region14: #{tds_gru_encoder.5} parent=1 // pred_check
      _
    $region15: #{tds_gru_encoder.5} parent=1 // pred_check_branch
      %22 = sbr.rel (0) target = $region17
    $region16: #{tds_gru_encoder.5} parent=1 // pred_region
      _
    $region17: #{tds_gru_encoder.5} parent=1 // pred_fallthru
      _
    // Predicated region
    $region18: #{tds_gru_encoder.5} parent=1 // pred_check
      _
    $region19: #{tds_gru_encoder.5} parent=1 // pred_check_branch
      %24 = sbr.rel (0) target = $region21
    $region20: #{tds_gru_encoder.5} parent=1 // pred_region
      _
    $region21: #{tds_gru_encoder.5} parent=1 // pred_fallthru
      _
    // Predicated region
    $region22: #{tds_gru_encoder.5} parent=1 // pred_check
      _
    $region23: #{tds_gru_encoder.5} parent=1 // pred_check_branch
      %26 = sbr.rel (0) target = $region25
    $region24: #{tds_gru_encoder.5} parent=1 // pred_region
      _
    $region25: #{tds_gru_encoder.5} parent=1 // pred_fallthru
      _
    // Predicated region
    $region26: #{tds_gru_encoder.5} parent=1 // pred_check
      _
    $region27: #{tds_gru_encoder.5} parent=1 // pred_check_branch
      %28 = sbr.rel (0) target = $region29
    $region28: #{tds_gru_encoder.5} parent=1 // pred_region
      _
    $region29: #{tds_gru_encoder.5} parent=1 // pred_fallthru
      _
    // Predicated region
    $region30: #{tds_gru_encoder.5} parent=1 // pred_check
      _
    $region31: #{tds_gru_encoder.5} parent=1 // pred_check_branch
      %30 = sbr.rel (0) target = $region33
    $region32: #{tds_gru_encoder.5} parent=1 // pred_region
      _
    $region33: #{tds_gru_encoder.5} parent=1 // pred_fallthru
      _
    // Predicated region
    $region34: #{tds_gru_encoder.5} parent=1 // pred_check
      _
    $region35: #{tds_gru_encoder.5} parent=1 // pred_check_branch
      %32 = sbr.rel (0) target = $region37
    $region36: #{tds_gru_encoder.5} parent=1 // pred_region
      _
    $region37: #{tds_gru_encoder.5} parent=1 // pred_fallthru
      _
    %v33 = vld [vmem:[%s0] sm:$0xff]
    %v34 = vld [vmem:[%s0 + $0x8] sm:$0xff]
    %v35 = vld [vmem:[%s1] sm:$0xff]
    %v36 = vld [vmem:[%s1 + $0x8] sm:$0xff]
    %v37 = vld [vmem:[%s1 + $0x10] sm:$0xff]
    %v38 = vld [vmem:[%s1 + $0x18] sm:$0xff]
    %v39 = vld [vmem:[%s1 + $0x20] sm:$0xff]
    %v40 = vld [vmem:[%s1 + $0x28] sm:$0xff]
    %v41 = vld [vmem:[%s1 + $0x30] sm:$0xff]
    %v42 = vld [vmem:[%s1 + $0x38] sm:$0xff]
    %v43 = vld [vmem:[%s2] sm:$0x1]
    %v45 = vlaneseq
    %v46 = vshrl.u32 %v45, 7
    %v47 = vsub.s32 0, %v46
    %v48 = vrot.slane %v43, %v47
    %vm50 = vcmask 523264
    %v52 = vsel %vm50, %v33, 0
    %v55 = vsel %vm50, %v34, 0
    %57 = vmatprep.subr.mxu0 0.0
    %58 = vmatpush1.msra.mxu0 %v35
    %59 = vmatprep.subr.mxu0 0.0
    %60 = vmatpush1.msra.mxu0 %v36
    %61 = vmatprep.subr.mxu0 0.0
    %62 = vmatpush1.msra.mxu0 %v37
    %63 = vmatprep.subr.mxu0 0.0
    %64 = vmatpush1.msra.mxu0 %v38
    %65 = vmatprep.subr.mxu0 0.0
    %66 = vmatpush1.msra.mxu0 %v39
    %67 = vmatprep.subr.mxu0 0.0
    %68 = vmatpush1.msra.mxu0 %v40
    %69 = vmatprep.subr.mxu0 0.0
    %70 = vmatpush1.msra.mxu0 %v41
    %71 = vmatprep.subr.mxu0 0.0
    %72 = vmatpush1.msra.mxu0 %v42
    %73 = vmatprep.subr.mxu0 0.0
    %74 = vmatpush1.msra.mxu0 0.0
    %75 = vmatprep.subr.mxu0 0.0
    %76 = vmatpush1.msra.mxu0 0.0
    %77 = vmatprep.subr.mxu0 0.0
    %78 = vmatpush1.msra.mxu0 0.0
    %79 = vmatprep.subr.mxu0 0.0
    %80 = vmatpush1.msra.mxu0 0.0
    %81 = vmatprep.subr.mxu0 0.0
    %82 = vmatpush1.msra.mxu0 0.0
    %83 = vmatprep.subr.mxu0 0.0
    %84 = vmatpush1.msra.mxu0 0.0
    %85 = vmatprep.subr.mxu0 0.0
    %86 = vmatpush1.msra.mxu0 0.0
    %87 = vmatprep.subr.mxu0 0.0
    %88 = vmatpush1.msra.mxu0 0.0
    %89 = vmatprep.subr.mxu0 0.0
    %90 = vmatpush1.msra.mxu0 0.0
    %91 = vmatprep.subr.mxu0 0.0
    %92 = vmatpush1.msra.mxu0 0.0
    %93 = vmatprep.subr.mxu0 0.0
    %94 = vmatpush1.msra.mxu0 0.0
    %95 = vmatprep.subr.mxu0 0.0
    %96 = vmatpush1.msra.mxu0 0.0
    %97 = vmatprep.subr.mxu0 0.0
    %98 = vmatpush1.msra.mxu0 0.0
    %99 = vmatprep.subr.mxu0 0.0
    %100 = vmatpush1.msra.mxu0 0.0
    %101 = vmatprep.subr.mxu0 0.0
    %102 = vmatpush1.msra.mxu0 0.0
    %103 = vmatprep.subr.mxu0 0.0
    %104 = vmatpush1.msra.mxu0 0.0
    %105 = vmatprep.subr.mxu0 0.0
    %106 = vmatpush1.msra.mxu0 0.0
    %107 = vmatprep.subr.mxu0 0.0
    %108 = vmatpush1.msra.mxu0 0.0
    %109 = vmatprep.subr.mxu0 0.0
    %110 = vmatpush1.msra.mxu0 0.0
    %111 = vmatprep.subr.mxu0 0.0
    %112 = vmatpush1.msra.mxu0 0.0
    %113 = vmatprep.subr.mxu0 0.0
    %114 = vmatpush1.msra.mxu0 0.0
    %115 = vmatprep.subr.mxu0 0.0
    %116 = vmatpush1.msra.mxu0 0.0
    %117 = vmatprep.subr.mxu0 0.0
    %118 = vmatpush1.msra.mxu0 0.0
    %119 = vmatprep.subr.mxu0 0.0
    %120 = vmatpush1.msra.mxu0 0.0
    %121 = vmatprep.mubr.f32.mxu0 0.0
    %122 = vmatmul.mubr.f32.gmra.mrb[0].mxu0 %v52
    %v123 = vpop.f32.mrb[0].mxu0
    %v124 = vadd.f32 %v48, %v123
    %v125 = vpop.f32.mrb[0].mxu0
    %126 = vmatprep.mubr.f32.mxu0 0.0
    %127 = vmatmul.mubr.f32.gmra.mrb[0].mxu0 %v55
    %v128 = vpop.f32.mrb[0].mxu0
    %v129 = vadd.f32 %v48, %v128
    %v130 = vpop.f32.mrb[0].mxu0
    %131 = vdwg.mxu0
    %v132 = vmax.f32 %v124, 0.0
    %v133 = vmax.f32 %v129, 0.0
    %v134 = vld [vmem:[%s3] sm:$0xff]
    %v135 = vld [vmem:[%s3 + $0x8] sm:$0xff]
    %v136 = vld [vmem:[%s3 + $0x10] sm:$0xff]
    %v137 = vld [vmem:[%s3 + $0x18] sm:$0xff]
    %v138 = vld [vmem:[%s3 + $0x20] sm:$0xff]
    %v139 = vld [vmem:[%s3 + $0x28] sm:$0xff]
    %v140 = vld [vmem:[%s3 + $0x30] sm:$0xff]
    %v141 = vld [vmem:[%s3 + $0x38] sm:$0xff]
    %v142 = vld [vmem:[%s4] sm:$0x1]
    %v144 = vlaneseq
    %v145 = vshrl.u32 %v144, 7
    %v146 = vsub.s32 0, %v145
    %v147 = vrot.slane %v142, %v146
    %v150 = vsel %vm50, %v132, 0
    %v153 = vsel %vm50, %v133, 0
    %155 = vmatprep.subr.mxu0 0.0
    %156 = vmatpush1.msra.mxu0 %v134
    %157 = vmatprep.subr.mxu0 0.0
    %158 = vmatpush1.msra.mxu0 %v135
    %159 = vmatprep.subr.mxu0 0.0
    %160 = vmatpush1.msra.mxu0 %v136
    %161 = vmatprep.subr.mxu0 0.0
    %162 = vmatpush1.msra.mxu0 %v137
    %163 = vmatprep.subr.mxu0 0.0
    %164 = vmatpush1.msra.mxu0 %v138
    %165 = vmatprep.subr.mxu0 0.0
    %166 = vmatpush1.msra.mxu0 %v139
    %167 = vmatprep.subr.mxu0 0.0
    %168 = vmatpush1.msra.mxu0 %v140
    %169 = vmatprep.subr.mxu0 0.0
    %170 = vmatpush1.msra.mxu0 %v141
    %171 = vmatprep.subr.mxu0 0.0
    %172 = vmatpush1.msra.mxu0 0.0
    %173 = vmatprep.subr.mxu0 0.0
    %174 = vmatpush1.msra.mxu0 0.0
    %175 = vmatprep.subr.mxu0 0.0
    %176 = vmatpush1.msra.mxu0 0.0
    %177 = vmatprep.subr.mxu0 0.0
    %178 = vmatpush1.msra.mxu0 0.0
    %179 = vmatprep.subr.mxu0 0.0
    %180 = vmatpush1.msra.mxu0 0.0
    %181 = vmatprep.subr.mxu0 0.0
    %182 = vmatpush1.msra.mxu0 0.0
    %183 = vmatprep.subr.mxu0 0.0
    %184 = vmatpush1.msra.mxu0 0.0
    %185 = vmatprep.subr.mxu0 0.0
    %186 = vmatpush1.msra.mxu0 0.0
    %187 = vmatprep.subr.mxu0 0.0
    %188 = vmatpush1.msra.mxu0 0.0
    %189 = vmatprep.subr.mxu0 0.0
    %190 = vmatpush1.msra.mxu0 0.0
    %191 = vmatprep.subr.mxu0 0.0
    %192 = vmatpush1.msra.mxu0 0.0
    %193 = vmatprep.subr.mxu0 0.0
    %194 = vmatpush1.msra.mxu0 0.0
    %195 = vmatprep.subr.mxu0 0.0
    %196 = vmatpush1.msra.mxu0 0.0
    %197 = vmatprep.subr.mxu0 0.0
    %198 = vmatpush1.msra.mxu0 0.0
    %199 = vmatprep.subr.mxu0 0.0
    %200 = vmatpush1.msra.mxu0 0.0
    %201 = vmatprep.subr.mxu0 0.0
    %202 = vmatpush1.msra.mxu0 0.0
    %203 = vmatprep.subr.mxu0 0.0
    %204 = vmatpush1.msra.mxu0 0.0
    %205 = vmatprep.subr.mxu0 0.0
    %206 = vmatpush1.msra.mxu0 0.0
    %207 = vmatprep.subr.mxu0 0.0
    %208 = vmatpush1.msra.mxu0 0.0
    %209 = vmatprep.subr.mxu0 0.0
    %210 = vmatpush1.msra.mxu0 0.0
    %211 = vmatprep.subr.mxu0 0.0
    %212 = vmatpush1.msra.mxu0 0.0
    %213 = vmatprep.subr.mxu0 0.0
    %214 = vmatpush1.msra.mxu0 0.0
    %215 = vmatprep.subr.mxu0 0.0
    %216 = vmatpush1.msra.mxu0 0.0
    %217 = vmatprep.subr.mxu0 0.0
    %218 = vmatpush1.msra.mxu0 0.0
    %219 = vmatprep.mubr.f32.mxu0 0.0
    %220 = vmatmul.mubr.f32.gmra.mrb[0].mxu0 %v150
    %v221 = vpop.f32.mrb[0].mxu0
    %v222 = vadd.f32 %v147, %v221
    %v223 = vpop.f32.mrb[0].mxu0
    %224 = vmatprep.mubr.f32.mxu0 0.0
    %225 = vmatmul.mubr.f32.gmra.mrb[0].mxu0 %v153
    %v226 = vpop.f32.mrb[0].mxu0
    %v227 = vadd.f32 %v147, %v226
    %v228 = vpop.f32.mrb[0].mxu0
    %229 = vdwg.mxu0
    %v230 = vadd.f32 %v222, %v33
    %v231 = vadd.f32 %v227, %v34
    %v232 = vsel %vm50, %v230, 0.0
    %233 = vadd.xlane.f32.xlu0 %v232
    %v234 = vpop.xlane.xlu0 %233
    %v235 = vsel %vm50, %v231, 0.0
    %236 = vadd.xlane.f32.xlu0 %v235
    %v237 = vpop.xlane.xlu0 %236
    %v238 = vrcp.pop 64.0
    %v239 = vmul.f32 %v234, %v238
    %v240 = vmul.f32 %v237, %v238
    %v241 = vsub.f32 %v230, %v239
    %v242 = vsub.f32 %v231, %v240
    %v243 = vmul.f32 %v241, %v241
    %v244 = vmul.f32 %v242, %v242
    %v245 = vsel %vm50, %v243, 0.0
    %246 = vadd.xlane.f32.xlu0 %v245
    %v247 = vpop.xlane.xlu0 %246
    %v248 = vsel %vm50, %v244, 0.0
    %249 = vadd.xlane.f32.xlu0 %v248
    %v250 = vpop.xlane.xlu0 %249
    %v251 = vmul.f32 %v247, %v238
    %v252 = vmul.f32 %v250, %v238
    %v253 = vadd.f32 %v251, 1e-05
    %v254 = vadd.f32 %v252, 1e-05
    %v255 = vrsqrt.pop %v253
    %v256 = vrsqrt.pop %v254
    %v257 = vmul.f32 %v241, %v255
    %v258 = vmul.f32 %v242, %v256
    %v259 = vld [vmem:[%s5] sm:$0x1]
    %v261 = vlaneseq
    %v262 = vshrl.u32 %v261, 7
    %v263 = vsub.s32 0, %v262
    %v264 = vrot.slane %v259, %v263
    %v266 = vmul.f32 %v257, %v264
    %v267 = vmul.f32 %v258, %v264
    %v268 = vld [vmem:[%s6] sm:$0x1]
    %v270 = vlaneseq
    %v271 = vshrl.u32 %v270, 7
    %v272 = vsub.s32 0, %v271
    %v273 = vrot.slane %v268, %v272
    %v275 = vadd.f32 %v266, %v273
    %v276 = vadd.f32 %v267, %v273
    %v277 = vld [vmem:[%s7] sm:$0xff]
    %v278 = vld [vmem:[%s7 + $0x8] sm:$0xff]
    %v279 = vld [vmem:[%s7 + $0x10] sm:$0xff]
    %v280 = vld [vmem:[%s7 + $0x18] sm:$0xff]
    %v281 = vld [vmem:[%s7 + $0x20] sm:$0xff]
    %v282 = vld [vmem:[%s7 + $0x28] sm:$0xff]
    %v283 = vld [vmem:[%s7 + $0x30] sm:$0xff]
    %v284 = vld [vmem:[%s7 + $0x38] sm:$0xff]
    %v285 = vld [vmem:[%s8] sm:$0x1]
    %v287 = vlaneseq
    %v288 = vshrl.u32 %v287, 7
    %v289 = vsub.s32 0, %v288
    %v290 = vrot.slane %v285, %v289
    %v293 = vsel %vm50, %v275, 0
    %v296 = vsel %vm50, %v276, 0
    %298 = vmatprep.subr.mxu0 0.0
    %299 = vmatpush1.msra.mxu0 %v277
    %300 = vmatprep.subr.mxu0 0.0
    %301 = vmatpush1.msra.mxu0 %v278
    %302 = vmatprep.subr.mxu0 0.0
    %303 = vmatpush1.msra.mxu0 %v279
    %304 = vmatprep.subr.mxu0 0.0
    %305 = vmatpush1.msra.mxu0 %v280
    %306 = vmatprep.subr.mxu0 0.0
    %307 = vmatpush1.msra.mxu0 %v281
    %308 = vmatprep.subr.mxu0 0.0
    %309 = vmatpush1.msra.mxu0 %v282
    %310 = vmatprep.subr.mxu0 0.0
    %311 = vmatpush1.msra.mxu0 %v283
    %312 = vmatprep.subr.mxu0 0.0
    %313 = vmatpush1.msra.mxu0 %v284
    %314 = vmatprep.subr.mxu0 0.0
    %315 = vmatpush1.msra.mxu0 0.0
    %316 = vmatprep.subr.mxu0 0.0
    %317 = vmatpush1.msra.mxu0 0.0
    %318 = vmatprep.subr.mxu0 0.0
    %319 = vmatpush1.msra.mxu0 0.0
    %320 = vmatprep.subr.mxu0 0.0
    %321 = vmatpush1.msra.mxu0 0.0
    %322 = vmatprep.subr.mxu0 0.0
    %323 = vmatpush1.msra.mxu0 0.0
    %324 = vmatprep.subr.mxu0 0.0
    %325 = vmatpush1.msra.mxu0 0.0
    %326 = vmatprep.subr.mxu0 0.0
    %327 = vmatpush1.msra.mxu0 0.0
    %328 = vmatprep.subr.mxu0 0.0
    %329 = vmatpush1.msra.mxu0 0.0
    %330 = vmatprep.subr.mxu0 0.0
    %331 = vmatpush1.msra.mxu0 0.0
    %332 = vmatprep.subr.mxu0 0.0
    %333 = vmatpush1.msra.mxu0 0.0
    %334 = vmatprep.subr.mxu0 0.0
    %335 = vmatpush1.msra.mxu0 0.0
    %336 = vmatprep.subr.mxu0 0.0
    %337 = vmatpush1.msra.mxu0 0.0
    %338 = vmatprep.subr.mxu0 0.0
    %339 = vmatpush1.msra.mxu0 0.0
    %340 = vmatprep.subr.mxu0 0.0
    %341 = vmatpush1.msra.mxu0 0.0
    %342 = vmatprep.subr.mxu0 0.0
    %343 = vmatpush1.msra.mxu0 0.0
    %344 = vmatprep.subr.mxu0 0.0
    %345 = vmatpush1.msra.mxu0 0.0
    %346 = vmatprep.subr.mxu0 0.0
    %347 = vmatpush1.msra.mxu0 0.0
    %348 = vmatprep.subr.mxu0 0.0
    %349 = vmatpush1.msra.mxu0 0.0
    %350 = vmatprep.subr.mxu0 0.0
    %351 = vmatpush1.msra.mxu0 0.0
    %352 = vmatprep.subr.mxu0 0.0
    %353 = vmatpush1.msra.mxu0 0.0
    %354 = vmatprep.subr.mxu0 0.0
    %355 = vmatpush1.msra.mxu0 0.0
    %356 = vmatprep.subr.mxu0 0.0
    %357 = vmatpush1.msra.mxu0 0.0
    %358 = vmatprep.subr.mxu0 0.0
    %359 = vmatpush1.msra.mxu0 0.0
    %360 = vmatprep.subr.mxu0 0.0
    %361 = vmatpush1.msra.mxu0 0.0
    %362 = vmatprep.mubr.f32.mxu0 0.0
    %363 = vmatmul.mubr.f32.gmra.mrb[0].mxu0 %v293
    %v364 = vpop.f32.mrb[0].mxu0
    %v365 = vadd.f32 %v290, %v364
    %v366 = vpop.f32.mrb[0].mxu0
    %367 = vmatprep.mubr.f32.mxu0 0.0
    %368 = vmatmul.mubr.f32.gmra.mrb[0].mxu0 %v296
    %v369 = vpop.f32.mrb[0].mxu0
    %v370 = vadd.f32 %v290, %v369
    %v371 = vpop.f32.mrb[0].mxu0
    %372 = vdwg.mxu0
    %373 = vst [vmem:[#allocation2] sm:$0xff] %v365
    %374 = vst [vmem:[#allocation2 + $0x8] sm:$0xff] %v370
    // Predicated region
    $region38: #{tds_gru_encoder.5} parent=1 // pred_check
      _
    $region39: #{tds_gru_encoder.5} parent=1 // pred_check_branch
      %376 = sbr.rel (0) target = $region41
    $region40: #{tds_gru_encoder.5} parent=1 // pred_region
      %s378 = ssub.s32 256, 256
      %379 = vsyncadd [#allocation3], %s378
      %s380 = sshll.u32 [#allocation2], 4
      %s381 = int_to_ptr.vmem [resolvable:$true] %s380
      %386 = dma.vmem_to_hbm [thread:$0]  %s381, 256, %s9, [#allocation3], 128, 128, 8
    $region41: #{tds_gru_encoder.5} parent=1 // pred_fallthru
      _
    // Predicated region
    $region42: #{tds_gru_encoder.5} parent=1 // pred_check
      _
    $region43: #{tds_gru_encoder.5} parent=1 // pred_check_branch
      %388 = sbr.rel (0) target = $region45
    $region44: #{tds_gru_encoder.5} parent=1 // pred_region
      %389 = dma.done [#allocation3], 256
    $region45: #{tds_gru_encoder.5} parent=1 // pred_fallthru
      _
    %390 = vsyncpa [#allocation3], 1

// kernel: tds_gru_encoder.3
$region0: #{tds_gru_encoder.3}
  #allocation0 [shape = 'u32[]', space=smem, size = 0x4, offset = 0x4, fixed_abs, tag = 'smem constant byte address 0x4 - core index']
  #allocation1 [shape = 'u32[144,128]{1,0:T(1,128)}', space=vmem, size = 0x12000, scoped, tag = 'internal scratch']
  %s0 = inlined_call_operand.vmem [shape: f32[8,3,2,32], index: 0, kind: input, shape index: {}]
  %s1 = inlined_call_operand.vmem [shape: f32[8,3,2,32], index: 1, kind: input, shape index: {}]
  %s2 = inlined_call_operand.vmem [shape: f32[6,32,32], index: 2, kind: input, shape index: {}]
  %s3 = inlined_call_operand.vmem [shape: f32[6,1,32], index: 3, kind: input, shape index: {}]
  %s4 = inlined_call_operand.vmem [shape: f32[8,2,64], index: 4, kind: output, shape index: {}]
  %s5 = sld [smem:[#allocation0]]
  $region33: #{tds_gru_encoder.3} parent=0
    _
  %s7 = ssub.s32 1, %s5
  %s8 = scalar_select 0, %s7, %s5
  // Predicated region
  $region2: #{tds_gru_encoder.3} parent=0 // pred_check
    _
  $region3: #{tds_gru_encoder.3} parent=0 // pred_check_branch
    %10 = sbr.rel (0) target = $region5
  $region4: #{tds_gru_encoder.3} parent=0 // pred_region
    _
  $region5: #{tds_gru_encoder.3} parent=0 // pred_fallthru
    _
  // Predicated region
  $region6: #{tds_gru_encoder.3} parent=0 // pred_check
    _
  $region7: #{tds_gru_encoder.3} parent=0 // pred_check_branch
    %12 = sbr.rel (0) target = $region9
  $region8: #{tds_gru_encoder.3} parent=0 // pred_region
    _
  $region9: #{tds_gru_encoder.3} parent=0 // pred_fallthru
    _
  // Predicated region
  $region10: #{tds_gru_encoder.3} parent=0 // pred_check
    _
  $region11: #{tds_gru_encoder.3} parent=0 // pred_check_branch
    %14 = sbr.rel (0) target = $region13
  $region12: #{tds_gru_encoder.3} parent=0 // pred_region
    _
  $region13: #{tds_gru_encoder.3} parent=0 // pred_fallthru
    _
  // Predicated region
  $region14: #{tds_gru_encoder.3} parent=0 // pred_check
    _
  $region15: #{tds_gru_encoder.3} parent=0 // pred_check_branch
    %16 = sbr.rel (0) target = $region17
  $region16: #{tds_gru_encoder.3} parent=0 // pred_region
    _
  $region17: #{tds_gru_encoder.3} parent=0 // pred_fallthru
    _
  %v17 = vld [vmem:[%s2] sm:$0xff]
  %v18 = vld [vmem:[%s2 + $0x8] sm:$0xff]
  %v19 = vld [vmem:[%s2 + $0x10] sm:$0xff]
  %v20 = vld [vmem:[%s2 + $0x18] sm:$0xff]
  %s21 = scalar_lea.vmem %s2, 32
  %v22 = vld [vmem:[%s21] sm:$0xff]
  %v23 = vld [vmem:[%s21 + $0x8] sm:$0xff]
  %v24 = vld [vmem:[%s21 + $0x10] sm:$0xff]
  %v25 = vld [vmem:[%s21 + $0x18] sm:$0xff]
  %s26 = scalar_lea.vmem %s2, 64
  %v27 = vld [vmem:[%s26] sm:$0xff]
  %v28 = vld [vmem:[%s26 + $0x8] sm:$0xff]
  %v29 = vld [vmem:[%s26 + $0x10] sm:$0xff]
  %v30 = vld [vmem:[%s26 + $0x18] sm:$0xff]
  %s31 = scalar_lea.vmem %s2, 96
  %v32 = vld [vmem:[%s31] sm:$0xff]
  %v33 = vld [vmem:[%s31 + $0x8] sm:$0xff]
  %v34 = vld [vmem:[%s31 + $0x10] sm:$0xff]
  %v35 = vld [vmem:[%s31 + $0x18] sm:$0xff]
  %s36 = scalar_lea.vmem %s2, 128
  %v37 = vld [vmem:[%s36] sm:$0xff]
  %v38 = vld [vmem:[%s36 + $0x8] sm:$0xff]
  %v39 = vld [vmem:[%s36 + $0x10] sm:$0xff]
  %v40 = vld [vmem:[%s36 + $0x18] sm:$0xff]
  %s41 = scalar_lea.vmem %s2, 160
  %v42 = vld [vmem:[%s41] sm:$0xff]
  %v43 = vld [vmem:[%s41 + $0x8] sm:$0xff]
  %v44 = vld [vmem:[%s41 + $0x10] sm:$0xff]
  %v45 = vld [vmem:[%s41 + $0x18] sm:$0xff]
  %v46 = vld [vmem:[%s3] sm:$0x1]
  %s47 = scalar_lea.vmem %s3, 1
  %v48 = vld [vmem:[%s47] sm:$0x1]
  %s49 = scalar_lea.vmem %s3, 2
  %v50 = vld [vmem:[%s49] sm:$0x1]
  %s51 = scalar_lea.vmem %s3, 3
  %v52 = vld [vmem:[%s51] sm:$0x1]
  %s53 = scalar_lea.vmem %s3, 4
  %v54 = vld [vmem:[%s53] sm:$0x1]
  %s55 = scalar_lea.vmem %s3, 5
  %v56 = vld [vmem:[%s55] sm:$0x1]
  loop: start=0, step=1, limit=8
  $region18: #{tds_gru_encoder.3} parent=0 // loop_pre_header
    _
  $region19: #{tds_gru_encoder.3} parent=0 // loop_header
    %s58 = sphi 0, %s62
    %p59 = scmp.ge.s32.totalorder %s58, 8
    %v63 = vphi 0.0, %v557
    %v64 = vphi 0.0, %v576
  $region20: #{tds_gru_encoder.3} parent=0 // loop_header_branch
    %61 = sbr.rel (%p59) target = $region24
  $region21: #{tds_gru_encoder.3} parent=0 // loop_body
    %s65 = ssub.s32 7, %s58
    %s66 = smul.u32 %s58, 6
    %s67 = scalar_lea.vmem %s0, %s66
    %v68 = vld [vmem:[%s67] sm:$0x3]
    %v69 = vld [vmem:[%s67 + $0x2] sm:$0x3]
    %v70 = vld [vmem:[%s67 + $0x4] sm:$0x3]
    %s71 = smul.u32 %s65, 6
    %s72 = scalar_lea.vmem %s1, %s71
    %v73 = vld [vmem:[%s72] sm:$0x3]
    %v74 = vld [vmem:[%s72 + $0x2] sm:$0x3]
    %v75 = vld [vmem:[%s72 + $0x4] sm:$0x3]
    %v77 = vlaneseq
    %v78 = vshrl.u32 %v77, 7
    %v79 = vsub.s32 0, %v78
    %v80 = vrot.slane %v46, %v79
    %vm82 = vcmask 261120
    %v84 = vsel %vm82, %v63, 0
    %86 = vmatprep.subr.mxu0 0.0
    %87 = vmatpush1.msra.mxu0 %v17
    %88 = vmatprep.subr.mxu0 0.0
    %89 = vmatpush1.msra.mxu0 %v18
    %90 = vmatprep.subr.mxu0 0.0
    %91 = vmatpush1.msra.mxu0 %v19
    %92 = vmatprep.subr.mxu0 0.0
    %93 = vmatpush1.msra.mxu0 %v20
    %94 = vmatprep.subr.mxu0 0.0
    %95 = vmatpush1.msra.mxu0 0.0
    %96 = vmatprep.subr.mxu0 0.0
    %97 = vmatpush1.msra.mxu0 0.0
    %98 = vmatprep.subr.mxu0 0.0
    %99 = vmatpush1.msra.mxu0 0.0
    %100 = vmatprep.subr.mxu0 0.0
    %101 = vmatpush1.msra.mxu0 0.0
    %102 = vmatprep.subr.mxu0 0.0
    %103 = vmatpush1.msra.mxu0 0.0
    %104 = vmatprep.subr.mxu0 0.0
    %105 = vmatpush1.msra.mxu0 0.0
    %106 = vmatprep.subr.mxu0 0.0
    %107 = vmatpush1.msra.mxu0 0.0
    %108 = vmatprep.subr.mxu0 0.0
    %109 = vmatpush1.msra.mxu0 0.0
    %110 = vmatprep.subr.mxu0 0.0
    %111 = vmatpush1.msra.mxu0 0.0
    %112 = vmatprep.subr.mxu0 0.0
    %113 = vmatpush1.msra.mxu0 0.0
    %114 = vmatprep.subr.mxu0 0.0
    %115 = vmatpush1.msra.mxu0 0.0
    %116 = vmatprep.subr.mxu0 0.0
    %117 = vmatpush1.msra.mxu0 0.0
    %118 = vmatprep.subr.mxu0 0.0
    %119 = vmatpush1.msra.mxu0 0.0
    %120 = vmatprep.subr.mxu0 0.0
    %121 = vmatpush1.msra.mxu0 0.0
    %122 = vmatprep.subr.mxu0 0.0
    %123 = vmatpush1.msra.mxu0 0.0
    %124 = vmatprep.subr.mxu0 0.0
    %125 = vmatpush1.msra.mxu0 0.0
    %126 = vmatprep.subr.mxu0 0.0
    %127 = vmatpush1.msra.mxu0 0.0
    %128 = vmatprep.subr.mxu0 0.0
    %129 = vmatpush1.msra.mxu0 0.0
    %130 = vmatprep.subr.mxu0 0.0
    %131 = vmatpush1.msra.mxu0 0.0
    %132 = vmatprep.subr.mxu0 0.0
    %133 = vmatpush1.msra.mxu0 0.0
    %134 = vmatprep.subr.mxu0 0.0
    %135 = vmatpush1.msra.mxu0 0.0
    %136 = vmatprep.subr.mxu0 0.0
    %137 = vmatpush1.msra.mxu0 0.0
    %138 = vmatprep.subr.mxu0 0.0
    %139 = vmatpush1.msra.mxu0 0.0
    %140 = vmatprep.subr.mxu0 0.0
    %141 = vmatpush1.msra.mxu0 0.0
    %142 = vmatprep.subr.mxu0 0.0
    %143 = vmatpush1.msra.mxu0 0.0
    %144 = vmatprep.subr.mxu0 0.0
    %145 = vmatpush1.msra.mxu0 0.0
    %146 = vmatprep.subr.mxu0 0.0
    %147 = vmatpush1.msra.mxu0 0.0
    %148 = vmatprep.subr.mxu0 0.0
    %149 = vmatpush1.msra.mxu0 0.0
    %150 = vmatprep.mubr.f32.mxu0 0.0
    %151 = vmatmul.mubr.f32.gmra.mrb[0].mxu0 %v84
    %v152 = vpop.f32.mrb[0].mxu0
    %v153 = vadd.f32 %v80, %v152
    %v154 = vpop.f32.mrb[0].mxu0
    %155 = vdwg.mxu0
    %v157 = vlaneseq
    %v158 = vshrl.u32 %v157, 7
    %v159 = vsub.s32 0, %v158
    %v160 = vrot.slane %v48, %v159
    %162 = vmatprep.subr.mxu0 0.0
    %163 = vmatpush1.msra.mxu0 %v22
    %164 = vmatprep.subr.mxu0 0.0
    %165 = vmatpush1.msra.mxu0 %v23
    %166 = vmatprep.subr.mxu0 0.0
    %167 = vmatpush1.msra.mxu0 %v24
    %168 = vmatprep.subr.mxu0 0.0
    %169 = vmatpush1.msra.mxu0 %v25
    %170 = vmatprep.subr.mxu0 0.0
    %171 = vmatpush1.msra.mxu0 0.0
    %172 = vmatprep.subr.mxu0 0.0
    %173 = vmatpush1.msra.mxu0 0.0
    %174 = vmatprep.subr.mxu0 0.0
    %175 = vmatpush1.msra.mxu0 0.0
    %176 = vmatprep.subr.mxu0 0.0
    %177 = vmatpush1.msra.mxu0 0.0
    %178 = vmatprep.subr.mxu0 0.0
    %179 = vmatpush1.msra.mxu0 0.0
    %180 = vmatprep.subr.mxu0 0.0
    %181 = vmatpush1.msra.mxu0 0.0
    %182 = vmatprep.subr.mxu0 0.0
    %183 = vmatpush1.msra.mxu0 0.0
    %184 = vmatprep.subr.mxu0 0.0
    %185 = vmatpush1.msra.mxu0 0.0
    %186 = vmatprep.subr.mxu0 0.0
    %187 = vmatpush1.msra.mxu0 0.0
    %188 = vmatprep.subr.mxu0 0.0
    %189 = vmatpush1.msra.mxu0 0.0
    %190 = vmatprep.subr.mxu0 0.0
    %191 = vmatpush1.msra.mxu0 0.0
    %192 = vmatprep.subr.mxu0 0.0
    %193 = vmatpush1.msra.mxu0 0.0
    %194 = vmatprep.subr.mxu0 0.0
    %195 = vmatpush1.msra.mxu0 0.0
    %196 = vmatprep.subr.mxu0 0.0
    %197 = vmatpush1.msra.mxu0 0.0
    %198 = vmatprep.subr.mxu0 0.0
    %199 = vmatpush1.msra.mxu0 0.0
    %200 = vmatprep.subr.mxu0 0.0
    %201 = vmatpush1.msra.mxu0 0.0
    %202 = vmatprep.subr.mxu0 0.0
    %203 = vmatpush1.msra.mxu0 0.0
    %204 = vmatprep.subr.mxu0 0.0
    %205 = vmatpush1.msra.mxu0 0.0
    %206 = vmatprep.subr.mxu0 0.0
    %207 = vmatpush1.msra.mxu0 0.0
    %208 = vmatprep.subr.mxu0 0.0
    %209 = vmatpush1.msra.mxu0 0.0
    %210 = vmatprep.subr.mxu0 0.0
    %211 = vmatpush1.msra.mxu0 0.0
    %212 = vmatprep.subr.mxu0 0.0
    %213 = vmatpush1.msra.mxu0 0.0
    %214 = vmatprep.subr.mxu0 0.0
    %215 = vmatpush1.msra.mxu0 0.0
    %216 = vmatprep.subr.mxu0 0.0
    %217 = vmatpush1.msra.mxu0 0.0
    %218 = vmatprep.subr.mxu0 0.0
    %219 = vmatpush1.msra.mxu0 0.0
    %220 = vmatprep.subr.mxu0 0.0
    %221 = vmatpush1.msra.mxu0 0.0
    %222 = vmatprep.subr.mxu0 0.0
    %223 = vmatpush1.msra.mxu0 0.0
    %224 = vmatprep.subr.mxu0 0.0
    %225 = vmatpush1.msra.mxu0 0.0
    %226 = vmatprep.mubr.f32.mxu0 0.0
    %227 = vmatmul.mubr.f32.gmra.mrb[0].mxu0 %v84
    %v228 = vpop.f32.mrb[0].mxu0
    %v229 = vadd.f32 %v160, %v228
    %v230 = vpop.f32.mrb[0].mxu0
    %231 = vdwg.mxu0
    %v233 = vlaneseq
    %v234 = vshrl.u32 %v233, 7
    %v235 = vsub.s32 0, %v234
    %v236 = vrot.slane %v50, %v235
    %238 = vmatprep.subr.mxu0 0.0
    %239 = vmatpush1.msra.mxu0 %v27
    %240 = vmatprep.subr.mxu0 0.0
    %241 = vmatpush1.msra.mxu0 %v28
    %242 = vmatprep.subr.mxu0 0.0
    %243 = vmatpush1.msra.mxu0 %v29
    %244 = vmatprep.subr.mxu0 0.0
    %245 = vmatpush1.msra.mxu0 %v30
    %246 = vmatprep.subr.mxu0 0.0
    %247 = vmatpush1.msra.mxu0 0.0
    %248 = vmatprep.subr.mxu0 0.0
    %249 = vmatpush1.msra.mxu0 0.0
    %250 = vmatprep.subr.mxu0 0.0
    %251 = vmatpush1.msra.mxu0 0.0
    %252 = vmatprep.subr.mxu0 0.0
    %253 = vmatpush1.msra.mxu0 0.0
    %254 = vmatprep.subr.mxu0 0.0
    %255 = vmatpush1.msra.mxu0 0.0
    %256 = vmatprep.subr.mxu0 0.0
    %257 = vmatpush1.msra.mxu0 0.0
    %258 = vmatprep.subr.mxu0 0.0
    %259 = vmatpush1.msra.mxu0 0.0
    %260 = vmatprep.subr.mxu0 0.0
    %261 = vmatpush1.msra.mxu0 0.0
    %262 = vmatprep.subr.mxu0 0.0
    %263 = vmatpush1.msra.mxu0 0.0
    %264 = vmatprep.subr.mxu0 0.0
    %265 = vmatpush1.msra.mxu0 0.0
    %266 = vmatprep.subr.mxu0 0.0
    %267 = vmatpush1.msra.mxu0 0.0
    %268 = vmatprep.subr.mxu0 0.0
    %269 = vmatpush1.msra.mxu0 0.0
    %270 = vmatprep.subr.mxu0 0.0
    %271 = vmatpush1.msra.mxu0 0.0
    %272 = vmatprep.subr.mxu0 0.0
    %273 = vmatpush1.msra.mxu0 0.0
    %274 = vmatprep.subr.mxu0 0.0
    %275 = vmatpush1.msra.mxu0 0.0
    %276 = vmatprep.subr.mxu0 0.0
    %277 = vmatpush1.msra.mxu0 0.0
    %278 = vmatprep.subr.mxu0 0.0
    %279 = vmatpush1.msra.mxu0 0.0
    %280 = vmatprep.subr.mxu0 0.0
    %281 = vmatpush1.msra.mxu0 0.0
    %282 = vmatprep.subr.mxu0 0.0
    %283 = vmatpush1.msra.mxu0 0.0
    %284 = vmatprep.subr.mxu0 0.0
    %285 = vmatpush1.msra.mxu0 0.0
    %286 = vmatprep.subr.mxu0 0.0
    %287 = vmatpush1.msra.mxu0 0.0
    %288 = vmatprep.subr.mxu0 0.0
    %289 = vmatpush1.msra.mxu0 0.0
    %290 = vmatprep.subr.mxu0 0.0
    %291 = vmatpush1.msra.mxu0 0.0
    %292 = vmatprep.subr.mxu0 0.0
    %293 = vmatpush1.msra.mxu0 0.0
    %294 = vmatprep.subr.mxu0 0.0
    %295 = vmatpush1.msra.mxu0 0.0
    %296 = vmatprep.subr.mxu0 0.0
    %297 = vmatpush1.msra.mxu0 0.0
    %298 = vmatprep.subr.mxu0 0.0
    %299 = vmatpush1.msra.mxu0 0.0
    %300 = vmatprep.subr.mxu0 0.0
    %301 = vmatpush1.msra.mxu0 0.0
    %302 = vmatprep.mubr.f32.mxu0 0.0
    %303 = vmatmul.mubr.f32.gmra.mrb[0].mxu0 %v84
    %v304 = vpop.f32.mrb[0].mxu0
    %v305 = vadd.f32 %v236, %v304
    %v306 = vpop.f32.mrb[0].mxu0
    %307 = vdwg.mxu0
    %v309 = vlaneseq
    %v310 = vshrl.u32 %v309, 7
    %v311 = vsub.s32 0, %v310
    %v312 = vrot.slane %v52, %v311
    %v315 = vsel %vm82, %v64, 0
    %317 = vmatprep.subr.mxu0 0.0
    %318 = vmatpush1.msra.mxu0 %v32
    %319 = vmatprep.subr.mxu0 0.0
    %320 = vmatpush1.msra.mxu0 %v33
    %321 = vmatprep.subr.mxu0 0.0
    %322 = vmatpush1.msra.mxu0 %v34
    %323 = vmatprep.subr.mxu0 0.0
    %324 = vmatpush1.msra.mxu0 %v35
    %325 = vmatprep.subr.mxu0 0.0
    %326 = vmatpush1.msra.mxu0 0.0
    %327 = vmatprep.subr.mxu0 0.0
    %328 = vmatpush1.msra.mxu0 0.0
    %329 = vmatprep.subr.mxu0 0.0
    %330 = vmatpush1.msra.mxu0 0.0
    %331 = vmatprep.subr.mxu0 0.0
    %332 = vmatpush1.msra.mxu0 0.0
    %333 = vmatprep.subr.mxu0 0.0
    %334 = vmatpush1.msra.mxu0 0.0
    %335 = vmatprep.subr.mxu0 0.0
    %336 = vmatpush1.msra.mxu0 0.0
    %337 = vmatprep.subr.mxu0 0.0
    %338 = vmatpush1.msra.mxu0 0.0
    %339 = vmatprep.subr.mxu0 0.0
    %340 = vmatpush1.msra.mxu0 0.0
    %341 = vmatprep.subr.mxu0 0.0
    %342 = vmatpush1.msra.mxu0 0.0
    %343 = vmatprep.subr.mxu0 0.0
    %344 = vmatpush1.msra.mxu0 0.0
    %345 = vmatprep.subr.mxu0 0.0
    %346 = vmatpush1.msra.mxu0 0.0
    %347 = vmatprep.subr.mxu0 0.0
    %348 = vmatpush1.msra.mxu0 0.0
    %349 = vmatprep.subr.mxu0 0.0
    %350 = vmatpush1.msra.mxu0 0.0
    %351 = vmatprep.subr.mxu0 0.0
    %352 = vmatpush1.msra.mxu0 0.0
    %353 = vmatprep.subr.mxu0 0.0
    %354 = vmatpush1.msra.mxu0 0.0
    %355 = vmatprep.subr.mxu0 0.0
    %356 = vmatpush1.msra.mxu0 0.0
    %357 = vmatprep.subr.mxu0 0.0
    %358 = vmatpush1.msra.mxu0 0.0
    %359 = vmatprep.subr.mxu0 0.0
    %360 = vmatpush1.msra.mxu0 0.0
    %361 = vmatprep.subr.mxu0 0.0
    %362 = vmatpush1.msra.mxu0 0.0
    %363 = vmatprep.subr.mxu0 0.0
    %364 = vmatpush1.msra.mxu0 0.0
    %365 = vmatprep.subr.mxu0 0.0
    %366 = vmatpush1.msra.mxu0 0.0
    %367 = vmatprep.subr.mxu0 0.0
    %368 = vmatpush1.msra.mxu0 0.0
    %369 = vmatprep.subr.mxu0 0.0
    %370 = vmatpush1.msra.mxu0 0.0
    %371 = vmatprep.subr.mxu0 0.0
    %372 = vmatpush1.msra.mxu0 0.0
    %373 = vmatprep.subr.mxu0 0.0
    %374 = vmatpush1.msra.mxu0 0.0
    %375 = vmatprep.subr.mxu0 0.0
    %376 = vmatpush1.msra.mxu0 0.0
    %377 = vmatprep.subr.mxu0 0.0
    %378 = vmatpush1.msra.mxu0 0.0
    %379 = vmatprep.subr.mxu0 0.0
    %380 = vmatpush1.msra.mxu0 0.0
    %381 = vmatprep.mubr.f32.mxu0 0.0
    %382 = vmatmul.mubr.f32.gmra.mrb[0].mxu0 %v315
    %v383 = vpop.f32.mrb[0].mxu0
    %v384 = vadd.f32 %v312, %v383
    %v385 = vpop.f32.mrb[0].mxu0
    %386 = vdwg.mxu0
    %v388 = vlaneseq
    %v389 = vshrl.u32 %v388, 7
    %v390 = vsub.s32 0, %v389
    %v391 = vrot.slane %v54, %v390
    %393 = vmatprep.subr.mxu0 0.0
    %394 = vmatpush1.msra.mxu0 %v37
    %395 = vmatprep.subr.mxu0 0.0
    %396 = vmatpush1.msra.mxu0 %v38
    %397 = vmatprep.subr.mxu0 0.0
    %398 = vmatpush1.msra.mxu0 %v39
    %399 = vmatprep.subr.mxu0 0.0
    %400 = vmatpush1.msra.mxu0 %v40
    %401 = vmatprep.subr.mxu0 0.0
    %402 = vmatpush1.msra.mxu0 0.0
    %403 = vmatprep.subr.mxu0 0.0
    %404 = vmatpush1.msra.mxu0 0.0
    %405 = vmatprep.subr.mxu0 0.0
    %406 = vmatpush1.msra.mxu0 0.0
    %407 = vmatprep.subr.mxu0 0.0
    %408 = vmatpush1.msra.mxu0 0.0
    %409 = vmatprep.subr.mxu0 0.0
    %410 = vmatpush1.msra.mxu0 0.0
    %411 = vmatprep.subr.mxu0 0.0
    %412 = vmatpush1.msra.mxu0 0.0
    %413 = vmatprep.subr.mxu0 0.0
    %414 = vmatpush1.msra.mxu0 0.0
    %415 = vmatprep.subr.mxu0 0.0
    %416 = vmatpush1.msra.mxu0 0.0
    %417 = vmatprep.subr.mxu0 0.0
    %418 = vmatpush1.msra.mxu0 0.0
    %419 = vmatprep.subr.mxu0 0.0
    %420 = vmatpush1.msra.mxu0 0.0
    %421 = vmatprep.subr.mxu0 0.0
    %422 = vmatpush1.msra.mxu0 0.0
    %423 = vmatprep.subr.mxu0 0.0
    %424 = vmatpush1.msra.mxu0 0.0
    %425 = vmatprep.subr.mxu0 0.0
    %426 = vmatpush1.msra.mxu0 0.0
    %427 = vmatprep.subr.mxu0 0.0
    %428 = vmatpush1.msra.mxu0 0.0
    %429 = vmatprep.subr.mxu0 0.0
    %430 = vmatpush1.msra.mxu0 0.0
    %431 = vmatprep.subr.mxu0 0.0
    %432 = vmatpush1.msra.mxu0 0.0
    %433 = vmatprep.subr.mxu0 0.0
    %434 = vmatpush1.msra.mxu0 0.0
    %435 = vmatprep.subr.mxu0 0.0
    %436 = vmatpush1.msra.mxu0 0.0
    %437 = vmatprep.subr.mxu0 0.0
    %438 = vmatpush1.msra.mxu0 0.0
    %439 = vmatprep.subr.mxu0 0.0
    %440 = vmatpush1.msra.mxu0 0.0
    %441 = vmatprep.subr.mxu0 0.0
    %442 = vmatpush1.msra.mxu0 0.0
    %443 = vmatprep.subr.mxu0 0.0
    %444 = vmatpush1.msra.mxu0 0.0
    %445 = vmatprep.subr.mxu0 0.0
    %446 = vmatpush1.msra.mxu0 0.0
    %447 = vmatprep.subr.mxu0 0.0
    %448 = vmatpush1.msra.mxu0 0.0
    %449 = vmatprep.subr.mxu0 0.0
    %450 = vmatpush1.msra.mxu0 0.0
    %451 = vmatprep.subr.mxu0 0.0
    %452 = vmatpush1.msra.mxu0 0.0
    %453 = vmatprep.subr.mxu0 0.0
    %454 = vmatpush1.msra.mxu0 0.0
    %455 = vmatprep.subr.mxu0 0.0
    %456 = vmatpush1.msra.mxu0 0.0
    %457 = vmatprep.mubr.f32.mxu0 0.0
    %458 = vmatmul.mubr.f32.gmra.mrb[0].mxu0 %v315
    %v459 = vpop.f32.mrb[0].mxu0
    %v460 = vadd.f32 %v391, %v459
    %v461 = vpop.f32.mrb[0].mxu0
    %462 = vdwg.mxu0
    %v464 = vlaneseq
    %v465 = vshrl.u32 %v464, 7
    %v466 = vsub.s32 0, %v465
    %v467 = vrot.slane %v56, %v466
    %469 = vmatprep.subr.mxu0 0.0
    %470 = vmatpush1.msra.mxu0 %v42
    %471 = vmatprep.subr.mxu0 0.0
    %472 = vmatpush1.msra.mxu0 %v43
    %473 = vmatprep.subr.mxu0 0.0
    %474 = vmatpush1.msra.mxu0 %v44
    %475 = vmatprep.subr.mxu0 0.0
    %476 = vmatpush1.msra.mxu0 %v45
    %477 = vmatprep.subr.mxu0 0.0
    %478 = vmatpush1.msra.mxu0 0.0
    %479 = vmatprep.subr.mxu0 0.0
    %480 = vmatpush1.msra.mxu0 0.0
    %481 = vmatprep.subr.mxu0 0.0
    %482 = vmatpush1.msra.mxu0 0.0
    %483 = vmatprep.subr.mxu0 0.0
    %484 = vmatpush1.msra.mxu0 0.0
    %485 = vmatprep.subr.mxu0 0.0
    %486 = vmatpush1.msra.mxu0 0.0
    %487 = vmatprep.subr.mxu0 0.0
    %488 = vmatpush1.msra.mxu0 0.0
    %489 = vmatprep.subr.mxu0 0.0
    %490 = vmatpush1.msra.mxu0 0.0
    %491 = vmatprep.subr.mxu0 0.0
    %492 = vmatpush1.msra.mxu0 0.0
    %493 = vmatprep.subr.mxu0 0.0
    %494 = vmatpush1.msra.mxu0 0.0
    %495 = vmatprep.subr.mxu0 0.0
    %496 = vmatpush1.msra.mxu0 0.0
    %497 = vmatprep.subr.mxu0 0.0
    %498 = vmatpush1.msra.mxu0 0.0
    %499 = vmatprep.subr.mxu0 0.0
    %500 = vmatpush1.msra.mxu0 0.0
    %501 = vmatprep.subr.mxu0 0.0
    %502 = vmatpush1.msra.mxu0 0.0
    %503 = vmatprep.subr.mxu0 0.0
    %504 = vmatpush1.msra.mxu0 0.0
    %505 = vmatprep.subr.mxu0 0.0
    %506 = vmatpush1.msra.mxu0 0.0
    %507 = vmatprep.subr.mxu0 0.0
    %508 = vmatpush1.msra.mxu0 0.0
    %509 = vmatprep.subr.mxu0 0.0
    %510 = vmatpush1.msra.mxu0 0.0
    %511 = vmatprep.subr.mxu0 0.0
    %512 = vmatpush1.msra.mxu0 0.0
    %513 = vmatprep.subr.mxu0 0.0
    %514 = vmatpush1.msra.mxu0 0.0
    %515 = vmatprep.subr.mxu0 0.0
    %516 = vmatpush1.msra.mxu0 0.0
    %517 = vmatprep.subr.mxu0 0.0
    %518 = vmatpush1.msra.mxu0 0.0
    %519 = vmatprep.subr.mxu0 0.0
    %520 = vmatpush1.msra.mxu0 0.0
    %521 = vmatprep.subr.mxu0 0.0
    %522 = vmatpush1.msra.mxu0 0.0
    %523 = vmatprep.subr.mxu0 0.0
    %524 = vmatpush1.msra.mxu0 0.0
    %525 = vmatprep.subr.mxu0 0.0
    %526 = vmatpush1.msra.mxu0 0.0
    %527 = vmatprep.subr.mxu0 0.0
    %528 = vmatpush1.msra.mxu0 0.0
    %529 = vmatprep.subr.mxu0 0.0
    %530 = vmatpush1.msra.mxu0 0.0
    %531 = vmatprep.subr.mxu0 0.0
    %532 = vmatpush1.msra.mxu0 0.0
    %533 = vmatprep.mubr.f32.mxu0 0.0
    %534 = vmatmul.mubr.f32.gmra.mrb[0].mxu0 %v315
    %v535 = vpop.f32.mrb[0].mxu0
    %v536 = vadd.f32 %v467, %v535
    %v537 = vpop.f32.mrb[0].mxu0
    %538 = vdwg.mxu0
    %v539 = vadd.f32 %v68, %v153
    %v540 = vsub.f32 0.0, %v539
    %v541 = vmul.f32 %v540, 1.442695
    %v542 = vpow.pop %v541
    %v543 = vadd.f32 %v542, 1.0
    %v544 = vrcp.pop %v543
    %v545 = vadd.f32 %v69, %v229
    %v546 = vsub.f32 0.0, %v545
    %v547 = vmul.f32 %v546, 1.442695
    %v548 = vpow.pop %v547
    %v549 = vadd.f32 %v548, 1.0
    %v550 = vrcp.pop %v549
    %v551 = vmul.f32 %v544, %v305
    %v552 = vadd.f32 %v70, %v551
    %v553 = vtanh.pop %v552
    %v554 = vsub.f32 1.0, %v550
    %v555 = vmul.f32 %v554, %v553
    %v556 = vmul.f32 %v550, %v63
    %v557 = vadd.f32 %v555, %v556
    %v558 = vadd.f32 %v73, %v384
    %v559 = vsub.f32 0.0, %v558
    %v560 = vmul.f32 %v559, 1.442695
    %v561 = vpow.pop %v560
    %v562 = vadd.f32 %v561, 1.0
    %v563 = vrcp.pop %v562
    %v564 = vadd.f32 %v74, %v460
    %v565 = vsub.f32 0.0, %v564
    %v566 = vmul.f32 %v565, 1.442695
    %v567 = vpow.pop %v566
    %v568 = vadd.f32 %v567, 1.0
    %v569 = vrcp.pop %v568
    %v570 = vmul.f32 %v563, %v536
    %v571 = vadd.f32 %v75, %v570
    %v572 = vtanh.pop %v571
    %v573 = vsub.f32 1.0, %v569
    %v574 = vmul.f32 %v573, %v572
    %v575 = vmul.f32 %v569, %v64
    %v576 = vadd.f32 %v574, %v575
    %s577 = smul.u32 %s58, 2
    %s578 = scalar_lea.vmem %s4, %s577
    %vm579 = vcmask 254976
    %580 = vst.msk [vmem:[%s578] sm:$0x3] %vm579, %v557
    %582 = vrot.lane.b32.xlu0 %v576, 32
    %v583 = vpop.permute.xlu0 %582
    %s585 = smul.u32 %s65, 2
    %s586 = scalar_lea.vmem %s4, %s585
    %vm587 = vcmask 517376
    %588 = vst.msk [vmem:[%s586] sm:$0x3] %vm587, %v583
  $region22: #{tds_gru_encoder.3} parent=0 // loop_footer
    %s62 = sadd.s32 1, %s58
  $region23: #{tds_gru_encoder.3} parent=0 // loop_footer_branch
    %57 = sbr.rel target = $region19
  $region24: #{tds_gru_encoder.3} parent=0 // loop_exit
    _
  // Predicated region
  $region25: #{tds_gru_encoder.3} parent=0 // pred_check
    _
  $region26: #{tds_gru_encoder.3} parent=0 // pred_check_branch
    %590 = sbr.rel (0) target = $region28
  $region27: #{tds_gru_encoder.3} parent=0 // pred_region
    _
  $region28: #{tds_gru_encoder.3} parent=0 // pred_fallthru
    _
  // Predicated region
  $region29: #{tds_gru_encoder.3} parent=0 // pred_check
    _
  $region30: #{tds_gru_encoder.3} parent=0 // pred_check_branch
    %592 = sbr.rel (0) target = $region32
  $region31: #{tds_gru_encoder.3} parent=0 // pred_region
    _
  $region32: #{tds_gru_encoder.3} parent=0 // pred_fallthru
    _

</llo_original>
